<compile_context>
chip_gen: v6e
topology: v6e:2x2x1
jax: 0.10.0
libtpu: 0.0.40
codegen_flags: <defaults>
</compile_context>

<pallas_src>
import functools
import math

import jax
import jax.numpy as jnp
from jax import lax
from jax.experimental import pallas as pl
from jax.experimental.pallas import tpu as pltpu

LAMBDA_GP = 10.0


def _round_up(x, m):
    return (x + m - 1) // m * m


def _gp_tile_kernel(alpha_ref, real_ref, fake_ref, w1_ref, b1_ref, w2_ref,
                    gram_ref, out_ref, *, tb, batch):
    i = pl.program_id(0)

    # interpolated = alpha * real + (1 - alpha) * fake   (f32 arithmetic on the
    # streamed f32 tiles; bf16 only appears right at the MXU input)
    alpha = alpha_ref[...]                                           # (TB, 1) f32
    x = (alpha * real_ref[...].astype(jnp.float32)
         + (1.0 - alpha) * fake_ref[...].astype(jnp.float32))        # (TB, F) f32

    # h = x @ W1 + b1  -- bf16 MXU operands, f32 accumulation
    h = jnp.dot(x.astype(jnp.bfloat16), w1_ref[...],
                preferred_element_type=jnp.float32) + b1_ref[...]    # (TB, Hp)

    # dD/dh = relu'(h) * W2   (padded hidden columns have W2 == 0)
    g_h = jnp.where(h > 0.0, w2_ref[...], 0.0)                       # (TB, Hp) f32

    # ||dD/dx||^2 row-wise without materializing the (TB, F) gradient:
    #   dD/dx = g_h @ W1^T  =>  ||.||^2 = rowsum((g_h @ (W1^T W1)) * g_h)
    t = jnp.dot(g_h, gram_ref[...], preferred_element_type=jnp.float32)
    sq_norm = jnp.sum(t * g_h, axis=1, keepdims=True)                # (TB, 1)
    sq_norm = jnp.maximum(sq_norm, 0.0)        # Gram form only PSD exactly; avoid sqrt(-eps)=NaN
    norm = jnp.sqrt(sq_norm)

    # mask rows that are batch padding, emit a per-tile partial sum
    row = i * tb + lax.broadcasted_iota(jnp.int32, (tb, 1), 0)
    contrib = jnp.where(row < batch, (norm - 1.0) ** 2, 0.0)
    out_ref[0, 0] = jnp.sum(contrib)


def _vmem_capacity_bytes():
    try:
        return int(pltpu.get_tpu_info().vmem_capacity_bytes)
    except Exception:
        return 64 * 2 ** 20          # conservative: v7x per-TensorCore VMEM


def gradient_penalty(real, fake, alpha, w1, w2_row, b1):
    """real, fake: (B, C, H, W) f32; alpha: (B, 1); w1: (F, HID); w2_row, b1: (1, HID)."""
    B = real.shape[0]
    F = math.prod(real.shape[1:])
    HID = w1.shape[1]
    HID_PAD = _round_up(HID, 128)

    # Stream real/fake as-is (reshape of a contiguous array is free).  No wrapper
    # astype: casting to bf16 happens inside the kernel, fused with the dot.
    real_f = real.reshape(B, F)
    fake_f = fake.reshape(B, F)
    alpha_f = alpha.reshape(B, 1).astype(jnp.float32)

    # zero-pad hidden dim to 128 lanes (exact no-op mathematically)
    w1_q = w1.astype(jnp.bfloat16)
    w1_p = jnp.zeros((F, HID_PAD), jnp.bfloat16).at[:, :HID].set(w1_q)
    b1_p = jnp.zeros((1, HID_PAD), jnp.float32).at[:, :HID].set(b1.astype(jnp.float32))
    w2_p = jnp.zeros((1, HID_PAD), jnp.float32).at[:, :HID].set(w2_row.astype(jnp.float32))

    # Gram matrix G = W1^T W1 (f32, built once outside from the same bf16-rounded
    # W1 the kernel sees); HIGHEST precision so this tiny matmul adds no error.
    w1_f32 = w1_p.astype(jnp.float32)
    gram = jnp.dot(w1_f32.T, w1_f32, precision=lax.Precision.HIGHEST)

    # ---- generation-aware tile sizing --------------------------------------
    vmem_cap = _vmem_capacity_bytes()
    # streaming budget for the double-buffered f32 real/fake tiles + in-kernel
    # interpolation temporaries; residents and headroom take the rest.
    stream_budget = max(vmem_cap // 3, 8 * 2 ** 20)
    bytes_per_row = 2 * 2 * F * 4 + F * 6        # 2 inputs x 2 bufs x f32  +  x(f32)+x(bf16)
    tb_cap = max(16, (stream_budget // bytes_per_row) // 16 * 16)

    b_rows = _round_up(B, 16)
    TB = int(min(512, tb_cap, b_rows))
    # v7x has 2 TensorCores: guarantee >= 2 "parallel" grid tiles when B allows.
    if b_rows >= 32:
        TB = int(min(TB, _round_up(b_rows // 2, 16)))
    TB = max(TB, 16)

    B_pad = _round_up(B, TB)
    num_tiles = B_pad // TB
    if B_pad != B:
        pad = ((0, B_pad - B), (0, 0))
        real_f = jnp.pad(real_f, pad)
        fake_f = jnp.pad(fake_f, pad)
        alpha_f = jnp.pad(alpha_f, pad)

    # explicit scoped-VMEM budget, sized to the generation (128 MiB on v5e/v6e,
    # 64 MiB on v7x) instead of a fixed 48 MiB cap.
    vmem_est = (2 * 2 * TB * F * 4               # streamed real/fake, double-buffered f32
                + TB * F * (4 + 2)               # interpolated x (f32) + bf16 cast
                + 2 * F * HID_PAD * 2            # W1 (allows for double-buffer fallback)
                + 2 * HID_PAD * HID_PAD * 4      # Gram
                + 8 * TB * HID_PAD * 4)          # h / g_h / t temporaries
    vmem_limit = int(min(max(vmem_cap - 8 * 2 ** 20, 32 * 2 ** 20),
                         max(3 * vmem_est // 2, 32 * 2 ** 20)))

    kernel = functools.partial(_gp_tile_kernel, tb=TB, batch=B)

    def make_call(single_buffer_residents):
        if single_buffer_residents:
            res_kwargs = {"pipeline_mode": pl.Buffered(1)}
        else:
            res_kwargs = {}

        def resident(shape):
            # constant index_map => never re-fetched; one buffer is enough.
            return pl.BlockSpec(shape, lambda i: (0, 0), **res_kwargs)

        return pl.pallas_call(
            kernel,
            out_shape=jax.ShapeDtypeStruct((num_tiles, 1), jnp.float32),
            grid=(num_tiles,),
            in_specs=[
                pl.BlockSpec((TB, 1), lambda i: (i, 0)),            # alpha (per-tile)
                pl.BlockSpec((TB, F), lambda i: (i, 0)),            # real  (streamed f32)
                pl.BlockSpec((TB, F), lambda i: (i, 0)),            # fake  (streamed f32)
                resident((F, HID_PAD)),                             # W1    (resident)
                resident((1, HID_PAD)),                             # b1    (resident)
                resident((1, HID_PAD)),                             # W2    (resident)
                resident((HID_PAD, HID_PAD)),                       # Gram  (resident)
            ],
            out_specs=pl.BlockSpec((1, 1), lambda i: (i, 0),
                                   memory_space=pltpu.MemorySpace.SMEM),
            compiler_params=pltpu.CompilerParams(
                dimension_semantics=("parallel",),
                vmem_limit_bytes=vmem_limit),
        )

    args = (alpha_f, real_f, fake_f, w1_p, b1_p, w2_p, gram)
    try:
        partials = make_call(True)(*args)
    except Exception:
        # Fallback for jax versions whose TPU pipeliner rejects pl.Buffered(1):
        # default double-buffered residents (correct, just uses more VMEM).
        partials = make_call(False)(*args)

    return (LAMBDA_GP / B) * jnp.sum(partials)


def _reference(real, fake, alpha, w1, w2_row, b1):
    """Pure-JAX autodiff reference (mirrors torch.autograd.grad).

    Matmul operands are rounded to bf16 exactly like the kernel (accumulation
    stays f32), so the two paths are directly comparable."""
    B = real.shape[0]
    rf = real.reshape(B, -1)
    ff = fake.reshape(B, -1)
    xf = alpha * rf + (1.0 - alpha) * ff
    w1q = w1.astype(jnp.bfloat16).astype(jnp.float32)

    def disc_sum(x):
        h = x.astype(jnp.bfloat16).astype(jnp.float32) @ w1q + b1
        return jnp.sum(jax.nn.relu(h) @ w2_row.T)     # grad_outputs = ones

    g = jax.grad(disc_sum)(xf)
    nrm = jnp.sqrt(jnp.sum(g * g, axis=1))
    return LAMBDA_GP * jnp.mean((nrm - 1.0) ** 2)


if __name__ == "__main__":
    key = jax.random.PRNGKey(0)
    k_real, k_fake, k_alpha, k_w1, k_w2, k_b1 = jax.random.split(key, 6)

    B, C, H, W = 2, 4, 16, 16
    HID = 32
    F = C * H * W

    real = jax.random.normal(k_real, (B, C, H, W), dtype=jnp.float32)
    fake = jax.random.normal(k_fake, (B, C, H, W), dtype=jnp.float32)
    # torch.rand(batch_size, 1, 1, 1) -> per-sample alpha, broadcast over features
    alpha = jax.random.uniform(k_alpha, (B, 1), dtype=jnp.float32)

    # Deterministic synthetic discriminator parameters
    w1 = jax.random.normal(k_w1, (F, HID), dtype=jnp.float32) * 0.02
    w2_row = jax.random.normal(k_w2, (1, HID), dtype=jnp.float32) * 0.1
    b1 = jax.random.normal(k_b1, (1, HID), dtype=jnp.float32) * 0.01

    out = gradient_penalty(real, fake, alpha, w1, w2_row, b1)
    out = jax.block_until_ready(out)

    ref = _reference(real, fake, alpha, w1, w2_row, b1)
    assert jnp.allclose(out, ref, rtol=2e-3, atol=1e-5), (out, ref)

    print("KERNEL_OK")
</pallas_src>

<mosaic_0001>
module attributes {stable_mosaic.version = 11 : i64} {
  func.func @_gp_tile_kernel(%arg0: i32, %arg1: memref<16x1xf32, #tpu.memory_space<vmem>>, %arg2: memref<16x1024xf32, #tpu.memory_space<vmem>>, %arg3: memref<16x1024xf32, #tpu.memory_space<vmem>>, %arg4: memref<1024x128xbf16, #tpu.memory_space<vmem>>, %arg5: memref<1x128xf32, #tpu.memory_space<vmem>>, %arg6: memref<1x128xf32, #tpu.memory_space<vmem>>, %arg7: memref<128x128xf32, #tpu.memory_space<vmem>>, %arg8: memref<1x1xf32, #tpu.memory_space<smem>>) attributes {dimension_semantics = [#tpu.dimension_semantics<parallel>], iteration_bounds = array<i64: 1>, scalar_prefetch = 0 : i64, scratch_operands = 0 : i64, tpu.core_type = #tpu.core_type<tc>, window_params = [{transform_indices = @transform_0, window_bounds = array<i64: 16, 1>}, {transform_indices = @transform_1, window_bounds = array<i64: 16, 1024>}, {transform_indices = @transform_2, window_bounds = array<i64: 16, 1024>}, {pipeline_mode = #tpu.pipeline_mode<synchronous>, transform_indices = @transform_3, window_bounds = array<i64: 1024, 128>}, {pipeline_mode = #tpu.pipeline_mode<synchronous>, transform_indices = @transform_4, window_bounds = array<i64: 1, 128>}, {pipeline_mode = #tpu.pipeline_mode<synchronous>, transform_indices = @transform_5, window_bounds = array<i64: 1, 128>}, {pipeline_mode = #tpu.pipeline_mode<synchronous>, transform_indices = @transform_6, window_bounds = array<i64: 128, 128>}, {transform_indices = @transform_7, window_bounds = array<i64: 1, 1>}]} {
    %c0 = arith.constant 0 : index
    %c0_0 = arith.constant 0 : index
    %0 = vector.load %arg1[%c0, %c0_0] : memref<16x1xf32, #tpu.memory_space<vmem>>, vector<16x1xf32>
    %c0_1 = arith.constant 0 : index
    %c0_2 = arith.constant 0 : index
    %1 = vector.load %arg2[%c0_1, %c0_2] : memref<16x1024xf32, #tpu.memory_space<vmem>>, vector<16x1024xf32>
    %2 = vector.broadcast %0 : vector<16x1xf32> to vector<16x1024xf32>
    %3 = arith.mulf %2, %1 : vector<16x1024xf32>
    %cst = arith.constant 1.000000e+00 : f32
    %4 = vector.broadcast %cst : f32 to vector<16x1xf32>
    %5 = arith.subf %4, %0 : vector<16x1xf32>
    %c0_3 = arith.constant 0 : index
    %c0_4 = arith.constant 0 : index
    %6 = vector.load %arg3[%c0_3, %c0_4] : memref<16x1024xf32, #tpu.memory_space<vmem>>, vector<16x1024xf32>
    %7 = vector.broadcast %5 : vector<16x1xf32> to vector<16x1024xf32>
    %8 = arith.mulf %7, %6 : vector<16x1024xf32>
    %9 = arith.addf %3, %8 : vector<16x1024xf32>
    %10 = arith.truncf %9 : vector<16x1024xf32> to vector<16x1024xbf16>
    %c0_5 = arith.constant 0 : index
    %c0_6 = arith.constant 0 : index
    %11 = vector.load %arg4[%c0_5, %c0_6] : memref<1024x128xbf16, #tpu.memory_space<vmem>>, vector<1024x128xbf16>
    %cst_7 = arith.constant dense<0.000000e+00> : vector<16x128xf32>
    %12 = tpu.matmul %10, %11, %cst_7 {dimension_numbers = #tpu.dot_dimension_numbers<[1], [0], [0], [1], [0, 0, 1, 1], [], []>} : vector<16x1024xbf16>, vector<1024x128xbf16>, vector<16x128xf32> -> vector<16x128xf32>
    %c0_8 = arith.constant 0 : index
    %c0_9 = arith.constant 0 : index
    %13 = vector.load %arg5[%c0_8, %c0_9] : memref<1x128xf32, #tpu.memory_space<vmem>>, vector<1x128xf32>
    %14 = vector.broadcast %13 : vector<1x128xf32> to vector<16x128xf32>
    %15 = arith.addf %12, %14 : vector<16x128xf32>
    %cst_10 = arith.constant 0.000000e+00 : f32
    %16 = vector.broadcast %cst_10 : f32 to vector<16x128xf32>
    %17 = arith.cmpf ogt, %15, %16 : vector<16x128xf32>
    %c0_11 = arith.constant 0 : index
    %c0_12 = arith.constant 0 : index
    %18 = vector.load %arg6[%c0_11, %c0_12] : memref<1x128xf32, #tpu.memory_space<vmem>>, vector<1x128xf32>
    %cst_13 = arith.constant 0.000000e+00 : f32
    %19 = vector.shape_cast %18 : vector<1x128xf32> to vector<1x128xf32>
    %20 = vector.broadcast %19 : vector<1x128xf32> to vector<16x128xf32>
    %21 = vector.broadcast %cst_13 : f32 to vector<16x128xf32>
    %22 = arith.select %17, %20, %21 : vector<16x128xi1>, vector<16x128xf32>
    %c0_14 = arith.constant 0 : index
    %c0_15 = arith.constant 0 : index
    %23 = vector.load %arg7[%c0_14, %c0_15] : memref<128x128xf32, #tpu.memory_space<vmem>>, vector<128x128xf32>
    %cst_16 = arith.constant dense<0.000000e+00> : vector<16x128xf32>
    %24 = tpu.matmul %22, %23, %cst_16 {dimension_numbers = #tpu.dot_dimension_numbers<[1], [0], [0], [1], [0, 0, 1, 1], [], []>} : vector<16x128xf32>, vector<128x128xf32>, vector<16x128xf32> -> vector<16x128xf32>
    %25 = arith.mulf %24, %22 : vector<16x128xf32>
    %cst_17 = arith.constant dense<0.000000e+00> : vector<16xf32>
    %26 = vector.multi_reduction <add>, %25, %cst_17 [1] : vector<16x128xf32> to vector<16xf32>
    %27 = vector.shape_cast %26 : vector<16xf32> to vector<16x1xf32>
    %cst_18 = arith.constant 0.000000e+00 : f32
    %28 = vector.broadcast %cst_18 : f32 to vector<16x1xf32>
    %29 = arith.maximumf %27, %28 : vector<16x1xf32>
    %30 = math.sqrt %29 : vector<16x1xf32>
    %c16_i32 = arith.constant 16 : i32
    %31 = arith.muli %arg0, %c16_i32 : i32
    %32 = tpu.iota {dimensions = array<i32: 0>} : vector<16x1xi32>
    %33 = vector.broadcast %31 : i32 to vector<16x1xi32>
    %34 = arith.addi %33, %32 : vector<16x1xi32>
    %c2_i32 = arith.constant 2 : i32
    %35 = vector.broadcast %c2_i32 : i32 to vector<16x1xi32>
    %36 = arith.cmpi slt, %34, %35 : vector<16x1xi32>
    %cst_19 = arith.constant 1.000000e+00 : f32
    %37 = vector.broadcast %cst_19 : f32 to vector<16x1xf32>
    %38 = arith.subf %30, %37 : vector<16x1xf32>
    %39 = arith.mulf %38, %38 : vector<16x1xf32>
    %cst_20 = arith.constant 0.000000e+00 : f32
    %40 = vector.broadcast %cst_20 : f32 to vector<16x1xf32>
    %41 = arith.select %36, %39, %40 : vector<16x1xi1>, vector<16x1xf32>
    %42 = vector.shape_cast %41 : vector<16x1xf32> to vector<1x16x1xf32>
    %cst_21 = arith.constant dense<0.000000e+00> : vector<1xf32>
    %43 = vector.multi_reduction <add>, %42, %cst_21 [1, 2] : vector<1x16x1xf32> to vector<1xf32>
    %44 = vector.shape_cast %43 : vector<1xf32> to vector<1x1x1xf32>
    %45 = vector.extract %44[0, 0, 0] : f32 from vector<1x1x1xf32>
    %c0_22 = arith.constant 0 : index
    %c0_23 = arith.constant 0 : index
    %46 = memref.load %arg8[%c0_22, %c0_23] : memref<1x1xf32, #tpu.memory_space<smem>>
    memref.store %45, %arg8[%c0_22, %c0_23] : memref<1x1xf32, #tpu.memory_space<smem>>
    return
  }
  func.func @transform_0(%arg0: i32) -> (i32, i32) {
    %c0_i32 = arith.constant 0 : i32
    %c0_i32_0 = arith.constant 0 : i32
    return %arg0, %c0_i32 : i32, i32
  }
  func.func @transform_1(%arg0: i32) -> (i32, i32) {
    %c0_i32 = arith.constant 0 : i32
    %c0_i32_0 = arith.constant 0 : i32
    return %arg0, %c0_i32 : i32, i32
  }
  func.func @transform_2(%arg0: i32) -> (i32, i32) {
    %c0_i32 = arith.constant 0 : i32
    %c0_i32_0 = arith.constant 0 : i32
    return %arg0, %c0_i32 : i32, i32
  }
  func.func @transform_3(%arg0: i32) -> (i32, i32) {
    %c0_i32 = arith.constant 0 : i32
    %c0_i32_0 = arith.constant 0 : i32
    %c0_i32_1 = arith.constant 0 : i32
    return %c0_i32, %c0_i32_0 : i32, i32
  }
  func.func @transform_4(%arg0: i32) -> (i32, i32) {
    %c0_i32 = arith.constant 0 : i32
    %c0_i32_0 = arith.constant 0 : i32
    %c0_i32_1 = arith.constant 0 : i32
    return %c0_i32, %c0_i32_0 : i32, i32
  }
  func.func @transform_5(%arg0: i32) -> (i32, i32) {
    %c0_i32 = arith.constant 0 : i32
    %c0_i32_0 = arith.constant 0 : i32
    %c0_i32_1 = arith.constant 0 : i32
    return %c0_i32, %c0_i32_0 : i32, i32
  }
  func.func @transform_6(%arg0: i32) -> (i32, i32) {
    %c0_i32 = arith.constant 0 : i32
    %c0_i32_0 = arith.constant 0 : i32
    %c0_i32_1 = arith.constant 0 : i32
    return %c0_i32, %c0_i32_0 : i32, i32
  }
  func.func @transform_7(%arg0: i32) -> (i32, i32) {
    %c0_i32 = arith.constant 0 : i32
    %c0_i32_0 = arith.constant 0 : i32
    return %arg0, %c0_i32 : i32, i32
  }
}

module attributes {stable_mosaic.version = 11 : i64} {
  func.func @_gp_tile_kernel(%arg0: i32, %arg1: memref<16x1xf32, #tpu.memory_space<vmem>>, %arg2: memref<16x1024xf32, #tpu.memory_space<vmem>>, %arg3: memref<16x1024xf32, #tpu.memory_space<vmem>>, %arg4: memref<1024x128xbf16, #tpu.memory_space<vmem>>, %arg5: memref<1x128xf32, #tpu.memory_space<vmem>>, %arg6: memref<1x128xf32, #tpu.memory_space<vmem>>, %arg7: memref<128x128xf32, #tpu.memory_space<vmem>>, %arg8: memref<1x1xf32, #tpu.memory_space<smem>>) attributes {dimension_semantics = [#tpu.dimension_semantics<parallel>], iteration_bounds = array<i64: 1>, scalar_prefetch = 0 : i64, scratch_operands = 0 : i64, tpu.core_type = #tpu.core_type<tc>, window_params = [{transform_indices = @transform_0, window_bounds = array<i64: 16, 1>}, {transform_indices = @transform_1, window_bounds = array<i64: 16, 1024>}, {transform_indices = @transform_2, window_bounds = array<i64: 16, 1024>}, {pipeline_mode = #tpu.pipeline_mode<synchronous>, transform_indices = @transform_3, window_bounds = array<i64: 1024, 128>}, {pipeline_mode = #tpu.pipeline_mode<synchronous>, transform_indices = @transform_4, window_bounds = array<i64: 1, 128>}, {pipeline_mode = #tpu.pipeline_mode<synchronous>, transform_indices = @transform_5, window_bounds = array<i64: 1, 128>}, {pipeline_mode = #tpu.pipeline_mode<synchronous>, transform_indices = @transform_6, window_bounds = array<i64: 128, 128>}, {transform_indices = @transform_7, window_bounds = array<i64: 1, 1>}]} {
    %c0 = arith.constant 0 : index
    %c0_0 = arith.constant 0 : index
    %0 = vector.load %arg1[%c0, %c0_0] : memref<16x1xf32, #tpu.memory_space<vmem>>, vector<16x1xf32>
    %c0_1 = arith.constant 0 : index
    %c0_2 = arith.constant 0 : index
    %1 = vector.load %arg2[%c0_1, %c0_2] : memref<16x1024xf32, #tpu.memory_space<vmem>>, vector<16x1024xf32>
    %2 = vector.broadcast %0 : vector<16x1xf32> to vector<16x1024xf32>
    %3 = arith.mulf %2, %1 : vector<16x1024xf32>
    %cst = arith.constant 1.000000e+00 : f32
    %4 = vector.broadcast %cst : f32 to vector<16x1xf32>
    %5 = arith.subf %4, %0 : vector<16x1xf32>
    %c0_3 = arith.constant 0 : index
    %c0_4 = arith.constant 0 : index
    %6 = vector.load %arg3[%c0_3, %c0_4] : memref<16x1024xf32, #tpu.memory_space<vmem>>, vector<16x1024xf32>
    %7 = vector.broadcast %5 : vector<16x1xf32> to vector<16x1024xf32>
    %8 = arith.mulf %7, %6 : vector<16x1024xf32>
    %9 = arith.addf %3, %8 : vector<16x1024xf32>
    %10 = arith.truncf %9 : vector<16x1024xf32> to vector<16x1024xbf16>
    %c0_5 = arith.constant 0 : index
    %c0_6 = arith.constant 0 : index
    %11 = vector.load %arg4[%c0_5, %c0_6] : memref<1024x128xbf16, #tpu.memory_space<vmem>>, vector<1024x128xbf16>
    %cst_7 = arith.constant dense<0.000000e+00> : vector<16x128xf32>
    %12 = tpu.matmul %10, %11, %cst_7 {dimension_numbers = #tpu.dot_dimension_numbers<[1], [0], [0], [1], [0, 0, 1, 1], [], []>} : vector<16x1024xbf16>, vector<1024x128xbf16>, vector<16x128xf32> -> vector<16x128xf32>
    %c0_8 = arith.constant 0 : index
    %c0_9 = arith.constant 0 : index
    %13 = vector.load %arg5[%c0_8, %c0_9] : memref<1x128xf32, #tpu.memory_space<vmem>>, vector<1x128xf32>
    %14 = vector.broadcast %13 : vector<1x128xf32> to vector<16x128xf32>
    %15 = arith.addf %12, %14 : vector<16x128xf32>
    %cst_10 = arith.constant 0.000000e+00 : f32
    %16 = vector.broadcast %cst_10 : f32 to vector<16x128xf32>
    %17 = arith.cmpf ogt, %15, %16 : vector<16x128xf32>
    %c0_11 = arith.constant 0 : index
    %c0_12 = arith.constant 0 : index
    %18 = vector.load %arg6[%c0_11, %c0_12] : memref<1x128xf32, #tpu.memory_space<vmem>>, vector<1x128xf32>
    %cst_13 = arith.constant 0.000000e+00 : f32
    %19 = vector.shape_cast %18 : vector<1x128xf32> to vector<1x128xf32>
    %20 = vector.broadcast %19 : vector<1x128xf32> to vector<16x128xf32>
    %21 = vector.broadcast %cst_13 : f32 to vector<16x128xf32>
    %22 = arith.select %17, %20, %21 : vector<16x128xi1>, vector<16x128xf32>
    %c0_14 = arith.constant 0 : index
    %c0_15 = arith.constant 0 : index
    %23 = vector.load %arg7[%c0_14, %c0_15] : memref<128x128xf32, #tpu.memory_space<vmem>>, vector<128x128xf32>
    %cst_16 = arith.constant dense<0.000000e+00> : vector<16x128xf32>
    %24 = tpu.matmul %22, %23, %cst_16 {dimension_numbers = #tpu.dot_dimension_numbers<[1], [0], [0], [1], [0, 0, 1, 1], [], []>} : vector<16x128xf32>, vector<128x128xf32>, vector<16x128xf32> -> vector<16x128xf32>
    %25 = arith.mulf %24, %22 : vector<16x128xf32>
    %cst_17 = arith.constant dense<0.000000e+00> : vector<16xf32>
    %26 = vector.multi_reduction <add>, %25, %cst_17 [1] : vector<16x128xf32> to vector<16xf32>
    %27 = vector.shape_cast %26 : vector<16xf32> to vector<16x1xf32>
    %cst_18 = arith.constant 0.000000e+00 : f32
    %28 = vector.broadcast %cst_18 : f32 to vector<16x1xf32>
    %29 = arith.maximumf %27, %28 : vector<16x1xf32>
    %30 = math.sqrt %29 : vector<16x1xf32>
    %c16_i32 = arith.constant 16 : i32
    %31 = arith.muli %arg0, %c16_i32 : i32
    %32 = tpu.iota {dimensions = array<i32: 0>} : vector<16x1xi32>
    %33 = vector.broadcast %31 : i32 to vector<16x1xi32>
    %34 = arith.addi %33, %32 : vector<16x1xi32>
    %c2_i32 = arith.constant 2 : i32
    %35 = vector.broadcast %c2_i32 : i32 to vector<16x1xi32>
    %36 = arith.cmpi slt, %34, %35 : vector<16x1xi32>
    %cst_19 = arith.constant 1.000000e+00 : f32
    %37 = vector.broadcast %cst_19 : f32 to vector<16x1xf32>
    %38 = arith.subf %30, %37 : vector<16x1xf32>
    %39 = arith.mulf %38, %38 : vector<16x1xf32>
    %cst_20 = arith.constant 0.000000e+00 : f32
    %40 = vector.broadcast %cst_20 : f32 to vector<16x1xf32>
    %41 = arith.select %36, %39, %40 : vector<16x1xi1>, vector<16x1xf32>
    %42 = vector.shape_cast %41 : vector<16x1xf32> to vector<1x16x1xf32>
    %cst_21 = arith.constant dense<0.000000e+00> : vector<1xf32>
    %43 = vector.multi_reduction <add>, %42, %cst_21 [1, 2] : vector<1x16x1xf32> to vector<1xf32>
    %44 = vector.shape_cast %43 : vector<1xf32> to vector<1x1x1xf32>
    %45 = vector.extract %44[0, 0, 0] : f32 from vector<1x1x1xf32>
    %c0_22 = arith.constant 0 : index
    %c0_23 = arith.constant 0 : index
    %46 = memref.load %arg8[%c0_22, %c0_23] : memref<1x1xf32, #tpu.memory_space<smem>>
    memref.store %45, %arg8[%c0_22, %c0_23] : memref<1x1xf32, #tpu.memory_space<smem>>
    return
  }
  func.func @transform_0(%arg0: i32) -> (i32, i32) {
    %c0_i32 = arith.constant 0 : i32
    %c0_i32_0 = arith.constant 0 : i32
    return %arg0, %c0_i32 : i32, i32
  }
  func.func @transform_1(%arg0: i32) -> (i32, i32) {
    %c0_i32 = arith.constant 0 : i32
    %c0_i32_0 = arith.constant 0 : i32
    return %arg0, %c0_i32 : i32, i32
  }
  func.func @transform_2(%arg0: i32) -> (i32, i32) {
    %c0_i32 = arith.constant 0 : i32
    %c0_i32_0 = arith.constant 0 : i32
    return %arg0, %c0_i32 : i32, i32
  }
  func.func @transform_3(%arg0: i32) -> (i32, i32) {
    %c0_i32 = arith.constant 0 : i32
    %c0_i32_0 = arith.constant 0 : i32
    %c0_i32_1 = arith.constant 0 : i32
    return %c0_i32, %c0_i32_0 : i32, i32
  }
  func.func @transform_4(%arg0: i32) -> (i32, i32) {
    %c0_i32 = arith.constant 0 : i32
    %c0_i32_0 = arith.constant 0 : i32
    %c0_i32_1 = arith.constant 0 : i32
    return %c0_i32, %c0_i32_0 : i32, i32
  }
  func.func @transform_5(%arg0: i32) -> (i32, i32) {
    %c0_i32 = arith.constant 0 : i32
    %c0_i32_0 = arith.constant 0 : i32
    %c0_i32_1 = arith.constant 0 : i32
    return %c0_i32, %c0_i32_0 : i32, i32
  }
  func.func @transform_6(%arg0: i32) -> (i32, i32) {
    %c0_i32 = arith.constant 0 : i32
    %c0_i32_0 = arith.constant 0 : i32
    %c0_i32_1 = arith.constant 0 : i32
    return %c0_i32, %c0_i32_0 : i32, i32
  }
  func.func @transform_7(%arg0: i32) -> (i32, i32) {
    %c0_i32 = arith.constant 0 : i32
    %c0_i32_0 = arith.constant 0 : i32
    return %arg0, %c0_i32 : i32, i32
  }
}

</mosaic_0001>

<llo_original>
// kernel: tpu_custom_call.1
$region0: #{tpu_custom_call.1}
  #allocation0 [shape = 'u32[]', space=smem, size = 0x4, offset = 0x4, fixed_abs, tag = 'smem constant byte address 0x4 - core index']
  #allocation1 [shape = 'u32[144,128]{1,0:T(1,128)}', space=vmem, size = 0x12000, scoped, tag = 'internal scratch']
  %s0 = inlined_call_operand.vmem [shape: f32[16,1], index: 0, kind: input, shape index: {}]
  %s1 = inlined_call_operand.hbm [shape: f32[16,1024], index: 1, kind: input, shape index: {}]
  %s2 = inlined_call_operand.hbm [shape: f32[16,1024], index: 2, kind: input, shape index: {}]
  %s3 = inlined_call_operand.hbm [shape: bf16[1024,128], index: 3, kind: input, shape index: {}]
  %s4 = inlined_call_operand.vmem [shape: f32[1,128], index: 4, kind: input, shape index: {}]
  %s5 = inlined_call_operand.vmem [shape: f32[1,128], index: 5, kind: input, shape index: {}]
  %s6 = inlined_call_operand.hbm [shape: f32[128,128], index: 6, kind: input, shape index: {}]
  %s7 = inlined_call_operand.hbm [shape: f32[1,1], index: 7, kind: output, shape index: {}]
  %s8 = sld [smem:[#allocation0]]
  $region54: #{tpu_custom_call.1} parent=0
    _
  %s10 = ssub.s32 1, %s8
  %s11 = scalar_select 0, %s10, %s8
  $region1: #{tpu_custom_call.1} parent=0
    #allocation2 [shape = 'u8[65536]{0}', space=vmem, size = 0x10000, scoped, tag = 'input window, operand 1, single buffered']
    #allocation3 [shape = 's32[1]{0}', space=sflag, size = 0x4, scoped, tag = 'scoped memory for tpu_custom_call.1']
    #allocation4 [shape = 's32[1]{0}', space=sflag, size = 0x4, scoped, tag = 'scoped memory for tpu_custom_call.1']
    #allocation5 [shape = 'u8[65536]{0}', space=vmem, size = 0x10000, scoped, tag = 'input window, operand 2, single buffered']
    #allocation6 [shape = 's32[1]{0}', space=sflag, size = 0x4, scoped, tag = 'scoped memory for tpu_custom_call.1']
    #allocation7 [shape = 'u8[262144]{0}', space=vmem, size = 0x40000, scoped, tag = 'input window, operand 3, single buffered']
    #allocation8 [shape = 'u8[65536]{0}', space=vmem, size = 0x10000, scoped, tag = 'input window, operand 6, single buffered']
    #allocation9 [shape = 's32[1]{0}', space=sflag, size = 0x4, scoped, tag = 'scoped memory for tpu_custom_call.1']
    #allocation10 [shape = 'u8[512]{0}', space=smem, size = 0x200, scoped, tag = 'output window, operand 0, single buffered']
    %12 = vsyncpa [#allocation3], 0
    %13 = vsyncpa [#allocation6], 0
    %14 = vsyncpa [#allocation9], 0
    %15 = vsyncpa [#allocation4], 0
    // Predicated region
    $region2: #{tpu_custom_call.1} parent=1 // pred_check
      _
    $region3: #{tpu_custom_call.1} parent=1 // pred_check_branch
      %17 = sbr.rel (0) target = $region5
    $region4: #{tpu_custom_call.1} parent=1 // pred_region
      _
    $region5: #{tpu_custom_call.1} parent=1 // pred_fallthru
      _
    // Predicated region
    $region6: #{tpu_custom_call.1} parent=1 // pred_check
      _
    $region7: #{tpu_custom_call.1} parent=1 // pred_check_branch
      %19 = sbr.rel (0) target = $region9
    $region8: #{tpu_custom_call.1} parent=1 // pred_region
      %s21 = ssub.s32 2048, 2048
      %22 = vsyncadd [#allocation3], %s21
      %s23 = sshll.u32 [#allocation2], 4
      %s24 = int_to_ptr.vmem [resolvable:$true] %s23
      %29 = dma.hbm_to_vmem [thread:$0]  %s1, 2048, %s24, [#allocation3], 1024, 1024, 64
    $region9: #{tpu_custom_call.1} parent=1 // pred_fallthru
      _
    // Predicated region
    $region10: #{tpu_custom_call.1} parent=1 // pred_check
      _
    $region11: #{tpu_custom_call.1} parent=1 // pred_check_branch
      %31 = sbr.rel (0) target = $region13
    $region12: #{tpu_custom_call.1} parent=1 // pred_region
      %s33 = ssub.s32 2048, 2048
      %34 = vsyncadd [#allocation6], %s33
      %s35 = sshll.u32 [#allocation5], 4
      %s36 = int_to_ptr.vmem [resolvable:$true] %s35
      %41 = dma.hbm_to_vmem [thread:$0]  %s2, 2048, %s36, [#allocation6], 1024, 1024, 64
    $region13: #{tpu_custom_call.1} parent=1 // pred_fallthru
      _
    // Predicated region
    $region14: #{tpu_custom_call.1} parent=1 // pred_check
      _
    $region15: #{tpu_custom_call.1} parent=1 // pred_check_branch
      %43 = sbr.rel (0) target = $region17
    $region16: #{tpu_custom_call.1} parent=1 // pred_region
      %s45 = ssub.s32 8192, 8192
      %46 = vsyncadd [#allocation6], %s45
      %s47 = sshll.u32 [#allocation7], 4
      %s48 = int_to_ptr.vmem [resolvable:$true] %s47
      %53 = dma.hbm_to_vmem [thread:$0]  %s3, 8192, %s48, [#allocation6], 64, 64, 4
    $region17: #{tpu_custom_call.1} parent=1 // pred_fallthru
      _
    // Predicated region
    $region18: #{tpu_custom_call.1} parent=1 // pred_check
      _
    $region19: #{tpu_custom_call.1} parent=1 // pred_check_branch
      %55 = sbr.rel (0) target = $region21
    $region20: #{tpu_custom_call.1} parent=1 // pred_region
      _
    $region21: #{tpu_custom_call.1} parent=1 // pred_fallthru
      _
    // Predicated region
    $region22: #{tpu_custom_call.1} parent=1 // pred_check
      _
    $region23: #{tpu_custom_call.1} parent=1 // pred_check_branch
      %57 = sbr.rel (0) target = $region25
    $region24: #{tpu_custom_call.1} parent=1 // pred_region
      _
    $region25: #{tpu_custom_call.1} parent=1 // pred_fallthru
      _
    // Predicated region
    $region26: #{tpu_custom_call.1} parent=1 // pred_check
      _
    $region27: #{tpu_custom_call.1} parent=1 // pred_check_branch
      %59 = sbr.rel (0) target = $region29
    $region28: #{tpu_custom_call.1} parent=1 // pred_region
      %s61 = ssub.s32 2048, 2048
      %62 = vsyncadd [#allocation9], %s61
      %s63 = sshll.u32 [#allocation8], 4
      %s64 = int_to_ptr.vmem [resolvable:$true] %s63
      %69 = dma.hbm_to_vmem [thread:$0]  %s6, 2048, %s64, [#allocation9], 128, 128, 8
    $region29: #{tpu_custom_call.1} parent=1 // pred_fallthru
      _
    // Predicated region
    $region30: #{tpu_custom_call.1} parent=1 // pred_check
      _
    $region31: #{tpu_custom_call.1} parent=1 // pred_check_branch
      %71 = sbr.rel (0) target = $region33
    $region32: #{tpu_custom_call.1} parent=1 // pred_region
      %72 = dma.done [#allocation3], 2048
    $region33: #{tpu_custom_call.1} parent=1 // pred_fallthru
      _
    // Predicated region
    $region34: #{tpu_custom_call.1} parent=1 // pred_check
      _
    $region35: #{tpu_custom_call.1} parent=1 // pred_check_branch
      %74 = sbr.rel (0) target = $region37
    $region36: #{tpu_custom_call.1} parent=1 // pred_region
      %75 = dma.done [#allocation6], 2048
    $region37: #{tpu_custom_call.1} parent=1 // pred_fallthru
      _
    // Predicated region
    $region38: #{tpu_custom_call.1} parent=1 // pred_check
      _
    $region39: #{tpu_custom_call.1} parent=1 // pred_check_branch
      %77 = sbr.rel (0) target = $region41
    $region40: #{tpu_custom_call.1} parent=1 // pred_region
      %78 = dma.done [#allocation6], 8192
    $region41: #{tpu_custom_call.1} parent=1 // pred_fallthru
      _
    // Predicated region
    $region42: #{tpu_custom_call.1} parent=1 // pred_check
      _
    $region43: #{tpu_custom_call.1} parent=1 // pred_check_branch
      %80 = sbr.rel (0) target = $region45
    $region44: #{tpu_custom_call.1} parent=1 // pred_region
      %81 = dma.done [#allocation9], 2048
    $region45: #{tpu_custom_call.1} parent=1 // pred_fallthru
      _
    %v83 = vld [vmem:[%s0] sm:$0xff]
    %v84 = vld [vmem:[%s0 + $0x8] sm:$0xff]
    %v85 = vld [vmem:[#allocation2] sm:$0xff]
    %v86 = vld [vmem:[#allocation2 + $0x8] sm:$0xff]
    %v87 = vld [vmem:[#allocation2 + $0x10] sm:$0xff]
    %v88 = vld [vmem:[#allocation2 + $0x18] sm:$0xff]
    %v89 = vld [vmem:[#allocation2 + $0x20] sm:$0xff]
    %v90 = vld [vmem:[#allocation2 + $0x28] sm:$0xff]
    %v91 = vld [vmem:[#allocation2 + $0x30] sm:$0xff]
    %v92 = vld [vmem:[#allocation2 + $0x38] sm:$0xff]
    %v93 = vld [vmem:[#allocation2 + $0x40] sm:$0xff]
    %v94 = vld [vmem:[#allocation2 + $0x48] sm:$0xff]
    %v95 = vld [vmem:[#allocation2 + $0x50] sm:$0xff]
    %v96 = vld [vmem:[#allocation2 + $0x58] sm:$0xff]
    %v97 = vld [vmem:[#allocation2 + $0x60] sm:$0xff]
    %v98 = vld [vmem:[#allocation2 + $0x68] sm:$0xff]
    %v99 = vld [vmem:[#allocation2 + $0x70] sm:$0xff]
    %v100 = vld [vmem:[#allocation2 + $0x78] sm:$0xff]
    %102 = vset.pattern.permute.xlu0 0
    %103 = vperm.xlu0 %102, %v83
    %v104 = vpop.permute.xlu0 %103
    %107 = vset.pattern.permute.xlu0 0
    %108 = vperm.xlu0 %107, %v84
    %v109 = vpop.permute.xlu0 %108
    %v111 = vmul.f32 %v104, %v85
    %v112 = vmul.f32 %v104, %v86
    %v113 = vmul.f32 %v104, %v87
    %v114 = vmul.f32 %v104, %v88
    %v115 = vmul.f32 %v104, %v89
    %v116 = vmul.f32 %v104, %v90
    %v117 = vmul.f32 %v104, %v91
    %v118 = vmul.f32 %v104, %v92
    %v119 = vmul.f32 %v109, %v93
    %v120 = vmul.f32 %v109, %v94
    %v121 = vmul.f32 %v109, %v95
    %v122 = vmul.f32 %v109, %v96
    %v123 = vmul.f32 %v109, %v97
    %v124 = vmul.f32 %v109, %v98
    %v125 = vmul.f32 %v109, %v99
    %v126 = vmul.f32 %v109, %v100
    %v127 = vsub.f32 1.0, %v83
    %v128 = vsub.f32 1.0, %v84
    %v129 = vld [vmem:[#allocation5] sm:$0xff]
    %v130 = vld [vmem:[#allocation5 + $0x8] sm:$0xff]
    %v131 = vld [vmem:[#allocation5 + $0x10] sm:$0xff]
    %v132 = vld [vmem:[#allocation5 + $0x18] sm:$0xff]
    %v133 = vld [vmem:[#allocation5 + $0x20] sm:$0xff]
    %v134 = vld [vmem:[#allocation5 + $0x28] sm:$0xff]
    %v135 = vld [vmem:[#allocation5 + $0x30] sm:$0xff]
    %v136 = vld [vmem:[#allocation5 + $0x38] sm:$0xff]
    %v137 = vld [vmem:[#allocation5 + $0x40] sm:$0xff]
    %v138 = vld [vmem:[#allocation5 + $0x48] sm:$0xff]
    %v139 = vld [vmem:[#allocation5 + $0x50] sm:$0xff]
    %v140 = vld [vmem:[#allocation5 + $0x58] sm:$0xff]
    %v141 = vld [vmem:[#allocation5 + $0x60] sm:$0xff]
    %v142 = vld [vmem:[#allocation5 + $0x68] sm:$0xff]
    %v143 = vld [vmem:[#allocation5 + $0x70] sm:$0xff]
    %v144 = vld [vmem:[#allocation5 + $0x78] sm:$0xff]
    %146 = vset.pattern.permute.xlu0 0
    %147 = vperm.xlu0 %146, %v127
    %v148 = vpop.permute.xlu0 %147
    %151 = vset.pattern.permute.xlu0 0
    %152 = vperm.xlu0 %151, %v128
    %v153 = vpop.permute.xlu0 %152
    %v155 = vmul.f32 %v148, %v129
    %v156 = vmul.f32 %v148, %v130
    %v157 = vmul.f32 %v148, %v131
    %v158 = vmul.f32 %v148, %v132
    %v159 = vmul.f32 %v148, %v133
    %v160 = vmul.f32 %v148, %v134
    %v161 = vmul.f32 %v148, %v135
    %v162 = vmul.f32 %v148, %v136
    %v163 = vmul.f32 %v153, %v137
    %v164 = vmul.f32 %v153, %v138
    %v165 = vmul.f32 %v153, %v139
    %v166 = vmul.f32 %v153, %v140
    %v167 = vmul.f32 %v153, %v141
    %v168 = vmul.f32 %v153, %v142
    %v169 = vmul.f32 %v153, %v143
    %v170 = vmul.f32 %v153, %v144
    %v171 = vadd.f32 %v111, %v155
    %v172 = vadd.f32 %v112, %v156
    %v173 = vadd.f32 %v113, %v157
    %v174 = vadd.f32 %v114, %v158
    %v175 = vadd.f32 %v115, %v159
    %v176 = vadd.f32 %v116, %v160
    %v177 = vadd.f32 %v117, %v161
    %v178 = vadd.f32 %v118, %v162
    %v179 = vadd.f32 %v119, %v163
    %v180 = vadd.f32 %v120, %v164
    %v181 = vadd.f32 %v121, %v165
    %v182 = vadd.f32 %v122, %v166
    %v183 = vadd.f32 %v123, %v167
    %v184 = vadd.f32 %v124, %v168
    %v185 = vadd.f32 %v125, %v169
    %v186 = vadd.f32 %v126, %v170
    %v187 = vpack.c.bf16 %v179, %v171
    %v188 = vpack.c.bf16 %v180, %v172
    %v189 = vpack.c.bf16 %v181, %v173
    %v190 = vpack.c.bf16 %v182, %v174
    %v191 = vpack.c.bf16 %v183, %v175
    %v192 = vpack.c.bf16 %v184, %v176
    %v193 = vpack.c.bf16 %v185, %v177
    %v194 = vpack.c.bf16 %v186, %v178
    %v195 = vld [vmem:[#allocation7] sm:$0xf]
    %v196 = vld [vmem:[#allocation7 + $0x4] sm:$0xf]
    %v197 = vld [vmem:[#allocation7 + $0x8] sm:$0xf]
    %v198 = vld [vmem:[#allocation7 + $0xc] sm:$0xf]
    %v199 = vld [vmem:[#allocation7 + $0x10] sm:$0xf]
    %v200 = vld [vmem:[#allocation7 + $0x14] sm:$0xf]
    %v201 = vld [vmem:[#allocation7 + $0x18] sm:$0xf]
    %v202 = vld [vmem:[#allocation7 + $0x1c] sm:$0xf]
    %v203 = vld [vmem:[#allocation7 + $0x20] sm:$0xf]
    %v204 = vld [vmem:[#allocation7 + $0x24] sm:$0xf]
    %v205 = vld [vmem:[#allocation7 + $0x28] sm:$0xf]
    %v206 = vld [vmem:[#allocation7 + $0x2c] sm:$0xf]
    %v207 = vld [vmem:[#allocation7 + $0x30] sm:$0xf]
    %v208 = vld [vmem:[#allocation7 + $0x34] sm:$0xf]
    %v209 = vld [vmem:[#allocation7 + $0x38] sm:$0xf]
    %v210 = vld [vmem:[#allocation7 + $0x3c] sm:$0xf]
    %v211 = vld [vmem:[#allocation7 + $0x40] sm:$0xf]
    %v212 = vld [vmem:[#allocation7 + $0x44] sm:$0xf]
    %v213 = vld [vmem:[#allocation7 + $0x48] sm:$0xf]
    %v214 = vld [vmem:[#allocation7 + $0x4c] sm:$0xf]
    %v215 = vld [vmem:[#allocation7 + $0x50] sm:$0xf]
    %v216 = vld [vmem:[#allocation7 + $0x54] sm:$0xf]
    %v217 = vld [vmem:[#allocation7 + $0x58] sm:$0xf]
    %v218 = vld [vmem:[#allocation7 + $0x5c] sm:$0xf]
    %v219 = vld [vmem:[#allocation7 + $0x60] sm:$0xf]
    %v220 = vld [vmem:[#allocation7 + $0x64] sm:$0xf]
    %v221 = vld [vmem:[#allocation7 + $0x68] sm:$0xf]
    %v222 = vld [vmem:[#allocation7 + $0x6c] sm:$0xf]
    %v223 = vld [vmem:[#allocation7 + $0x70] sm:$0xf]
    %v224 = vld [vmem:[#allocation7 + $0x74] sm:$0xf]
    %v225 = vld [vmem:[#allocation7 + $0x78] sm:$0xf]
    %v226 = vld [vmem:[#allocation7 + $0x7c] sm:$0xf]
    %v227 = vld [vmem:[#allocation7 + $0x80] sm:$0xf]
    %v228 = vld [vmem:[#allocation7 + $0x84] sm:$0xf]
    %v229 = vld [vmem:[#allocation7 + $0x88] sm:$0xf]
    %v230 = vld [vmem:[#allocation7 + $0x8c] sm:$0xf]
    %v231 = vld [vmem:[#allocation7 + $0x90] sm:$0xf]
    %v232 = vld [vmem:[#allocation7 + $0x94] sm:$0xf]
    %v233 = vld [vmem:[#allocation7 + $0x98] sm:$0xf]
    %v234 = vld [vmem:[#allocation7 + $0x9c] sm:$0xf]
    %v235 = vld [vmem:[#allocation7 + $0xa0] sm:$0xf]
    %v236 = vld [vmem:[#allocation7 + $0xa4] sm:$0xf]
    %v237 = vld [vmem:[#allocation7 + $0xa8] sm:$0xf]
    %v238 = vld [vmem:[#allocation7 + $0xac] sm:$0xf]
    %v239 = vld [vmem:[#allocation7 + $0xb0] sm:$0xf]
    %v240 = vld [vmem:[#allocation7 + $0xb4] sm:$0xf]
    %v241 = vld [vmem:[#allocation7 + $0xb8] sm:$0xf]
    %v242 = vld [vmem:[#allocation7 + $0xbc] sm:$0xf]
    %v243 = vld [vmem:[#allocation7 + $0xc0] sm:$0xf]
    %v244 = vld [vmem:[#allocation7 + $0xc4] sm:$0xf]
    %v245 = vld [vmem:[#allocation7 + $0xc8] sm:$0xf]
    %v246 = vld [vmem:[#allocation7 + $0xcc] sm:$0xf]
    %v247 = vld [vmem:[#allocation7 + $0xd0] sm:$0xf]
    %v248 = vld [vmem:[#allocation7 + $0xd4] sm:$0xf]
    %v249 = vld [vmem:[#allocation7 + $0xd8] sm:$0xf]
    %v250 = vld [vmem:[#allocation7 + $0xdc] sm:$0xf]
    %v251 = vld [vmem:[#allocation7 + $0xe0] sm:$0xf]
    %v252 = vld [vmem:[#allocation7 + $0xe4] sm:$0xf]
    %v253 = vld [vmem:[#allocation7 + $0xe8] sm:$0xf]
    %v254 = vld [vmem:[#allocation7 + $0xec] sm:$0xf]
    %v255 = vld [vmem:[#allocation7 + $0xf0] sm:$0xf]
    %v256 = vld [vmem:[#allocation7 + $0xf4] sm:$0xf]
    %v257 = vld [vmem:[#allocation7 + $0xf8] sm:$0xf]
    %v258 = vld [vmem:[#allocation7 + $0xfc] sm:$0xf]
    %v259 = vld [vmem:[#allocation7 + $0x100] sm:$0xf]
    %v260 = vld [vmem:[#allocation7 + $0x104] sm:$0xf]
    %v261 = vld [vmem:[#allocation7 + $0x108] sm:$0xf]
    %v262 = vld [vmem:[#allocation7 + $0x10c] sm:$0xf]
    %v263 = vld [vmem:[#allocation7 + $0x110] sm:$0xf]
    %v264 = vld [vmem:[#allocation7 + $0x114] sm:$0xf]
    %v265 = vld [vmem:[#allocation7 + $0x118] sm:$0xf]
    %v266 = vld [vmem:[#allocation7 + $0x11c] sm:$0xf]
    %v267 = vld [vmem:[#allocation7 + $0x120] sm:$0xf]
    %v268 = vld [vmem:[#allocation7 + $0x124] sm:$0xf]
    %v269 = vld [vmem:[#allocation7 + $0x128] sm:$0xf]
    %v270 = vld [vmem:[#allocation7 + $0x12c] sm:$0xf]
    %v271 = vld [vmem:[#allocation7 + $0x130] sm:$0xf]
    %v272 = vld [vmem:[#allocation7 + $0x134] sm:$0xf]
    %v273 = vld [vmem:[#allocation7 + $0x138] sm:$0xf]
    %v274 = vld [vmem:[#allocation7 + $0x13c] sm:$0xf]
    %v275 = vld [vmem:[#allocation7 + $0x140] sm:$0xf]
    %v276 = vld [vmem:[#allocation7 + $0x144] sm:$0xf]
    %v277 = vld [vmem:[#allocation7 + $0x148] sm:$0xf]
    %v278 = vld [vmem:[#allocation7 + $0x14c] sm:$0xf]
    %v279 = vld [vmem:[#allocation7 + $0x150] sm:$0xf]
    %v280 = vld [vmem:[#allocation7 + $0x154] sm:$0xf]
    %v281 = vld [vmem:[#allocation7 + $0x158] sm:$0xf]
    %v282 = vld [vmem:[#allocation7 + $0x15c] sm:$0xf]
    %v283 = vld [vmem:[#allocation7 + $0x160] sm:$0xf]
    %v284 = vld [vmem:[#allocation7 + $0x164] sm:$0xf]
    %v285 = vld [vmem:[#allocation7 + $0x168] sm:$0xf]
    %v286 = vld [vmem:[#allocation7 + $0x16c] sm:$0xf]
    %v287 = vld [vmem:[#allocation7 + $0x170] sm:$0xf]
    %v288 = vld [vmem:[#allocation7 + $0x174] sm:$0xf]
    %v289 = vld [vmem:[#allocation7 + $0x178] sm:$0xf]
    %v290 = vld [vmem:[#allocation7 + $0x17c] sm:$0xf]
    %v291 = vld [vmem:[#allocation7 + $0x180] sm:$0xf]
    %v292 = vld [vmem:[#allocation7 + $0x184] sm:$0xf]
    %v293 = vld [vmem:[#allocation7 + $0x188] sm:$0xf]
    %v294 = vld [vmem:[#allocation7 + $0x18c] sm:$0xf]
    %v295 = vld [vmem:[#allocation7 + $0x190] sm:$0xf]
    %v296 = vld [vmem:[#allocation7 + $0x194] sm:$0xf]
    %v297 = vld [vmem:[#allocation7 + $0x198] sm:$0xf]
    %v298 = vld [vmem:[#allocation7 + $0x19c] sm:$0xf]
    %v299 = vld [vmem:[#allocation7 + $0x1a0] sm:$0xf]
    %v300 = vld [vmem:[#allocation7 + $0x1a4] sm:$0xf]
    %v301 = vld [vmem:[#allocation7 + $0x1a8] sm:$0xf]
    %v302 = vld [vmem:[#allocation7 + $0x1ac] sm:$0xf]
    %v303 = vld [vmem:[#allocation7 + $0x1b0] sm:$0xf]
    %v304 = vld [vmem:[#allocation7 + $0x1b4] sm:$0xf]
    %v305 = vld [vmem:[#allocation7 + $0x1b8] sm:$0xf]
    %v306 = vld [vmem:[#allocation7 + $0x1bc] sm:$0xf]
    %v307 = vld [vmem:[#allocation7 + $0x1c0] sm:$0xf]
    %v308 = vld [vmem:[#allocation7 + $0x1c4] sm:$0xf]
    %v309 = vld [vmem:[#allocation7 + $0x1c8] sm:$0xf]
    %v310 = vld [vmem:[#allocation7 + $0x1cc] sm:$0xf]
    %v311 = vld [vmem:[#allocation7 + $0x1d0] sm:$0xf]
    %v312 = vld [vmem:[#allocation7 + $0x1d4] sm:$0xf]
    %v313 = vld [vmem:[#allocation7 + $0x1d8] sm:$0xf]
    %v314 = vld [vmem:[#allocation7 + $0x1dc] sm:$0xf]
    %v315 = vld [vmem:[#allocation7 + $0x1e0] sm:$0xf]
    %v316 = vld [vmem:[#allocation7 + $0x1e4] sm:$0xf]
    %v317 = vld [vmem:[#allocation7 + $0x1e8] sm:$0xf]
    %v318 = vld [vmem:[#allocation7 + $0x1ec] sm:$0xf]
    %v319 = vld [vmem:[#allocation7 + $0x1f0] sm:$0xf]
    %v320 = vld [vmem:[#allocation7 + $0x1f4] sm:$0xf]
    %v321 = vld [vmem:[#allocation7 + $0x1f8] sm:$0xf]
    %v322 = vld [vmem:[#allocation7 + $0x1fc] sm:$0xf]
    %v323 = vld [vmem:[%s4] sm:$0x1]
    %v325 = vlaneseq
    %v326 = vshrl.u32 %v325, 7
    %v327 = vsub.s32 0, %v326
    %v328 = vrot.slane %v323, %v327
    %v458 = vunpack.c.l.b16 %v195
    %v459 = vunpack.c.l.b16 %v196
    %v460 = vunpack.c.l.b16 %v197
    %v461 = vunpack.c.l.b16 %v198
    %v462 = vunpack.c.l.b16 %v199
    %v463 = vunpack.c.l.b16 %v200
    %v464 = vunpack.c.l.b16 %v201
    %v465 = vunpack.c.l.b16 %v202
    %v466 = vunpack.c.l.b16 %v203
    %v467 = vunpack.c.l.b16 %v204
    %v468 = vunpack.c.l.b16 %v205
    %v469 = vunpack.c.l.b16 %v206
    %v470 = vunpack.c.l.b16 %v207
    %v471 = vunpack.c.l.b16 %v208
    %v472 = vunpack.c.l.b16 %v209
    %v473 = vunpack.c.l.b16 %v210
    %v474 = vunpack.c.l.b16 %v211
    %v475 = vunpack.c.l.b16 %v212
    %v476 = vunpack.c.l.b16 %v213
    %v477 = vunpack.c.l.b16 %v214
    %v478 = vunpack.c.l.b16 %v215
    %v479 = vunpack.c.l.b16 %v216
    %v480 = vunpack.c.l.b16 %v217
    %v481 = vunpack.c.l.b16 %v218
    %v482 = vunpack.c.l.b16 %v219
    %v483 = vunpack.c.l.b16 %v220
    %v484 = vunpack.c.l.b16 %v221
    %v485 = vunpack.c.l.b16 %v222
    %v486 = vunpack.c.l.b16 %v223
    %v487 = vunpack.c.l.b16 %v224
    %v488 = vunpack.c.l.b16 %v225
    %v489 = vunpack.c.l.b16 %v226
    %v490 = vunpack.c.l.b16 %v227
    %v491 = vunpack.c.l.b16 %v228
    %v492 = vunpack.c.l.b16 %v229
    %v493 = vunpack.c.l.b16 %v230
    %v494 = vunpack.c.l.b16 %v231
    %v495 = vunpack.c.l.b16 %v232
    %v496 = vunpack.c.l.b16 %v233
    %v497 = vunpack.c.l.b16 %v234
    %v498 = vunpack.c.l.b16 %v235
    %v499 = vunpack.c.l.b16 %v236
    %v500 = vunpack.c.l.b16 %v237
    %v501 = vunpack.c.l.b16 %v238
    %v502 = vunpack.c.l.b16 %v239
    %v503 = vunpack.c.l.b16 %v240
    %v504 = vunpack.c.l.b16 %v241
    %v505 = vunpack.c.l.b16 %v242
    %v506 = vunpack.c.l.b16 %v243
    %v507 = vunpack.c.l.b16 %v244
    %v508 = vunpack.c.l.b16 %v245
    %v509 = vunpack.c.l.b16 %v246
    %v510 = vunpack.c.l.b16 %v247
    %v511 = vunpack.c.l.b16 %v248
    %v512 = vunpack.c.l.b16 %v249
    %v513 = vunpack.c.l.b16 %v250
    %v514 = vunpack.c.l.b16 %v251
    %v515 = vunpack.c.l.b16 %v252
    %v516 = vunpack.c.l.b16 %v253
    %v517 = vunpack.c.l.b16 %v254
    %v518 = vunpack.c.l.b16 %v255
    %v519 = vunpack.c.l.b16 %v256
    %v520 = vunpack.c.l.b16 %v257
    %v521 = vunpack.c.l.b16 %v258
    %v522 = vunpack.c.l.b16 %v259
    %v523 = vunpack.c.l.b16 %v260
    %v524 = vunpack.c.l.b16 %v261
    %v525 = vunpack.c.l.b16 %v262
    %v526 = vunpack.c.l.b16 %v263
    %v527 = vunpack.c.l.b16 %v264
    %v528 = vunpack.c.l.b16 %v265
    %v529 = vunpack.c.l.b16 %v266
    %v530 = vunpack.c.l.b16 %v267
    %v531 = vunpack.c.l.b16 %v268
    %v532 = vunpack.c.l.b16 %v269
    %v533 = vunpack.c.l.b16 %v270
    %v534 = vunpack.c.l.b16 %v271
    %v535 = vunpack.c.l.b16 %v272
    %v536 = vunpack.c.l.b16 %v273
    %v537 = vunpack.c.l.b16 %v274
    %v538 = vunpack.c.l.b16 %v275
    %v539 = vunpack.c.l.b16 %v276
    %v540 = vunpack.c.l.b16 %v277
    %v541 = vunpack.c.l.b16 %v278
    %v542 = vunpack.c.l.b16 %v279
    %v543 = vunpack.c.l.b16 %v280
    %v544 = vunpack.c.l.b16 %v281
    %v545 = vunpack.c.l.b16 %v282
    %v546 = vunpack.c.l.b16 %v283
    %v547 = vunpack.c.l.b16 %v284
    %v548 = vunpack.c.l.b16 %v285
    %v549 = vunpack.c.l.b16 %v286
    %v550 = vunpack.c.l.b16 %v287
    %v551 = vunpack.c.l.b16 %v288
    %v552 = vunpack.c.l.b16 %v289
    %v553 = vunpack.c.l.b16 %v290
    %v554 = vunpack.c.l.b16 %v291
    %v555 = vunpack.c.l.b16 %v292
    %v556 = vunpack.c.l.b16 %v293
    %v557 = vunpack.c.l.b16 %v294
    %v558 = vunpack.c.l.b16 %v295
    %v559 = vunpack.c.l.b16 %v296
    %v560 = vunpack.c.l.b16 %v297
    %v561 = vunpack.c.l.b16 %v298
    %v562 = vunpack.c.l.b16 %v299
    %v563 = vunpack.c.l.b16 %v300
    %v564 = vunpack.c.l.b16 %v301
    %v565 = vunpack.c.l.b16 %v302
    %v566 = vunpack.c.l.b16 %v303
    %v567 = vunpack.c.l.b16 %v304
    %v568 = vunpack.c.l.b16 %v305
    %v569 = vunpack.c.l.b16 %v306
    %v570 = vunpack.c.l.b16 %v307
    %v571 = vunpack.c.l.b16 %v308
    %v572 = vunpack.c.l.b16 %v309
    %v573 = vunpack.c.l.b16 %v310
    %v574 = vunpack.c.l.b16 %v311
    %v575 = vunpack.c.l.b16 %v312
    %v576 = vunpack.c.l.b16 %v313
    %v577 = vunpack.c.l.b16 %v314
    %v578 = vunpack.c.l.b16 %v315
    %v579 = vunpack.c.l.b16 %v316
    %v580 = vunpack.c.l.b16 %v317
    %v581 = vunpack.c.l.b16 %v318
    %v582 = vunpack.c.l.b16 %v319
    %v583 = vunpack.c.l.b16 %v320
    %v584 = vunpack.c.l.b16 %v321
    %v585 = vunpack.c.l.b16 %v322
    %v586 = vpack.c.b16 %v459, %v458
    %v587 = vpack.c.b16 %v461, %v460
    %v588 = vpack.c.b16 %v463, %v462
    %v589 = vpack.c.b16 %v465, %v464
    %v590 = vpack.c.b16 %v467, %v466
    %v591 = vpack.c.b16 %v469, %v468
    %v592 = vpack.c.b16 %v471, %v470
    %v593 = vpack.c.b16 %v473, %v472
    %v594 = vpack.c.b16 %v475, %v474
    %v595 = vpack.c.b16 %v477, %v476
    %v596 = vpack.c.b16 %v479, %v478
    %v597 = vpack.c.b16 %v481, %v480
    %v598 = vpack.c.b16 %v483, %v482
    %v599 = vpack.c.b16 %v485, %v484
    %v600 = vpack.c.b16 %v487, %v486
    %v601 = vpack.c.b16 %v489, %v488
    %v602 = vpack.c.b16 %v491, %v490
    %v603 = vpack.c.b16 %v493, %v492
    %v604 = vpack.c.b16 %v495, %v494
    %v605 = vpack.c.b16 %v497, %v496
    %v606 = vpack.c.b16 %v499, %v498
    %v607 = vpack.c.b16 %v501, %v500
    %v608 = vpack.c.b16 %v503, %v502
    %v609 = vpack.c.b16 %v505, %v504
    %v610 = vpack.c.b16 %v507, %v506
    %v611 = vpack.c.b16 %v509, %v508
    %v612 = vpack.c.b16 %v511, %v510
    %v613 = vpack.c.b16 %v513, %v512
    %v614 = vpack.c.b16 %v515, %v514
    %v615 = vpack.c.b16 %v517, %v516
    %v616 = vpack.c.b16 %v519, %v518
    %v617 = vpack.c.b16 %v521, %v520
    %v618 = vpack.c.b16 %v523, %v522
    %v619 = vpack.c.b16 %v525, %v524
    %v620 = vpack.c.b16 %v527, %v526
    %v621 = vpack.c.b16 %v529, %v528
    %v622 = vpack.c.b16 %v531, %v530
    %v623 = vpack.c.b16 %v533, %v532
    %v624 = vpack.c.b16 %v535, %v534
    %v625 = vpack.c.b16 %v537, %v536
    %v626 = vpack.c.b16 %v539, %v538
    %v627 = vpack.c.b16 %v541, %v540
    %v628 = vpack.c.b16 %v543, %v542
    %v629 = vpack.c.b16 %v545, %v544
    %v630 = vpack.c.b16 %v547, %v546
    %v631 = vpack.c.b16 %v549, %v548
    %v632 = vpack.c.b16 %v551, %v550
    %v633 = vpack.c.b16 %v553, %v552
    %v634 = vpack.c.b16 %v555, %v554
    %v635 = vpack.c.b16 %v557, %v556
    %v636 = vpack.c.b16 %v559, %v558
    %v637 = vpack.c.b16 %v561, %v560
    %v638 = vpack.c.b16 %v563, %v562
    %v639 = vpack.c.b16 %v565, %v564
    %v640 = vpack.c.b16 %v567, %v566
    %v641 = vpack.c.b16 %v569, %v568
    %v642 = vpack.c.b16 %v571, %v570
    %v643 = vpack.c.b16 %v573, %v572
    %v644 = vpack.c.b16 %v575, %v574
    %v645 = vpack.c.b16 %v577, %v576
    %v646 = vpack.c.b16 %v579, %v578
    %v647 = vpack.c.b16 %v581, %v580
    %v648 = vpack.c.b16 %v583, %v582
    %v649 = vpack.c.b16 %v585, %v584
    %714 = vmatprep.subr.bf16.mxu0 0
    %715 = vmatpush1.bf16.msra.mxu0 %v593
    %716 = vmatprep.subr.bf16.mxu0 0
    %717 = vmatpush1.bf16.msra.mxu0 %v592
    %718 = vmatprep.subr.bf16.mxu0 0
    %719 = vmatpush1.bf16.msra.mxu0 %v591
    %720 = vmatprep.subr.bf16.mxu0 0
    %721 = vmatpush1.bf16.msra.mxu0 %v590
    %722 = vmatprep.subr.bf16.mxu0 0
    %723 = vmatpush1.bf16.msra.mxu0 %v589
    %724 = vmatprep.subr.bf16.mxu0 0
    %725 = vmatpush1.bf16.msra.mxu0 %v588
    %726 = vmatprep.subr.bf16.mxu0 0
    %727 = vmatpush1.bf16.msra.mxu0 %v587
    %728 = vmatprep.subr.bf16.mxu0 0
    %729 = vmatpush1.bf16.msra.mxu0 %v586
    %730 = vmatprep.subr.bf16.mxu0 0
    %731 = vmatpush2.bf16.msra.mxu0 %v601
    %732 = vmatprep.subr.bf16.mxu0 0
    %733 = vmatpush2.bf16.msra.mxu0 %v600
    %734 = vmatprep.subr.bf16.mxu0 0
    %735 = vmatpush2.bf16.msra.mxu0 %v599
    %736 = vmatprep.subr.bf16.mxu0 0
    %737 = vmatpush2.bf16.msra.mxu0 %v598
    %738 = vmatprep.subr.bf16.mxu0 0
    %739 = vmatpush2.bf16.msra.mxu0 %v597
    %740 = vmatprep.subr.bf16.mxu0 0
    %741 = vmatpush2.bf16.msra.mxu0 %v596
    %742 = vmatprep.subr.bf16.mxu0 0
    %743 = vmatpush2.bf16.msra.mxu0 %v595
    %744 = vmatprep.subr.bf16.mxu0 0
    %745 = vmatpush2.bf16.msra.mxu0 %v594
    %746 = vmatprep.mubr.bf16.mxu0 %v188
    %747 = vmatmul.mubr.bf16.gmra.mxu0 %v187
    %v748 = vpop.f32.mrf.mxu0
    %v749 = vadd.f32 %v328, %v748
    %v750 = vpop.f32.mrf.mxu0
    %v751 = vpop.f32.mrf.mxu0
    %v752 = vadd.f32 %v328, %v751
    %v753 = vpop.f32.mrf.mxu0
    %754 = vdwg.mxu0
    %755 = vmatprep.subr.bf16.mxu0 0
    %756 = vmatpush1.bf16.msra.mxu0 %v609
    %757 = vmatprep.subr.bf16.mxu0 0
    %758 = vmatpush1.bf16.msra.mxu0 %v608
    %759 = vmatprep.subr.bf16.mxu0 0
    %760 = vmatpush1.bf16.msra.mxu0 %v607
    %761 = vmatprep.subr.bf16.mxu0 0
    %762 = vmatpush1.bf16.msra.mxu0 %v606
    %763 = vmatprep.subr.bf16.mxu0 0
    %764 = vmatpush1.bf16.msra.mxu0 %v605
    %765 = vmatprep.subr.bf16.mxu0 0
    %766 = vmatpush1.bf16.msra.mxu0 %v604
    %767 = vmatprep.subr.bf16.mxu0 0
    %768 = vmatpush1.bf16.msra.mxu0 %v603
    %769 = vmatprep.subr.bf16.mxu0 0
    %770 = vmatpush1.bf16.msra.mxu0 %v602
    %771 = vmatprep.subr.bf16.mxu0 0
    %772 = vmatpush2.bf16.msra.mxu0 %v617
    %773 = vmatprep.subr.bf16.mxu0 0
    %774 = vmatpush2.bf16.msra.mxu0 %v616
    %775 = vmatprep.subr.bf16.mxu0 0
    %776 = vmatpush2.bf16.msra.mxu0 %v615
    %777 = vmatprep.subr.bf16.mxu0 0
    %778 = vmatpush2.bf16.msra.mxu0 %v614
    %779 = vmatprep.subr.bf16.mxu0 0
    %780 = vmatpush2.bf16.msra.mxu0 %v613
    %781 = vmatprep.subr.bf16.mxu0 0
    %782 = vmatpush2.bf16.msra.mxu0 %v612
    %783 = vmatprep.subr.bf16.mxu0 0
    %784 = vmatpush2.bf16.msra.mxu0 %v611
    %785 = vmatprep.subr.bf16.mxu0 0
    %786 = vmatpush2.bf16.msra.mxu0 %v610
    %787 = vmatprep.mubr.bf16.mxu0 %v190
    %788 = vmatmul.mubr.bf16.gmra.mxu0 %v189
    %v789 = vpop.f32.mrf.mxu0
    %v790 = vadd.f32 %v749, %v789
    %v791 = vpop.f32.mrf.mxu0
    %v792 = vpop.f32.mrf.mxu0
    %v793 = vadd.f32 %v752, %v792
    %v794 = vpop.f32.mrf.mxu0
    %795 = vdwg.mxu0
    %796 = vmatprep.subr.bf16.mxu0 0
    %797 = vmatpush1.bf16.msra.mxu0 %v625
    %798 = vmatprep.subr.bf16.mxu0 0
    %799 = vmatpush1.bf16.msra.mxu0 %v624
    %800 = vmatprep.subr.bf16.mxu0 0
    %801 = vmatpush1.bf16.msra.mxu0 %v623
    %802 = vmatprep.subr.bf16.mxu0 0
    %803 = vmatpush1.bf16.msra.mxu0 %v622
    %804 = vmatprep.subr.bf16.mxu0 0
    %805 = vmatpush1.bf16.msra.mxu0 %v621
    %806 = vmatprep.subr.bf16.mxu0 0
    %807 = vmatpush1.bf16.msra.mxu0 %v620
    %808 = vmatprep.subr.bf16.mxu0 0
    %809 = vmatpush1.bf16.msra.mxu0 %v619
    %810 = vmatprep.subr.bf16.mxu0 0
    %811 = vmatpush1.bf16.msra.mxu0 %v618
    %812 = vmatprep.subr.bf16.mxu0 0
    %813 = vmatpush2.bf16.msra.mxu0 %v633
    %814 = vmatprep.subr.bf16.mxu0 0
    %815 = vmatpush2.bf16.msra.mxu0 %v632
    %816 = vmatprep.subr.bf16.mxu0 0
    %817 = vmatpush2.bf16.msra.mxu0 %v631
    %818 = vmatprep.subr.bf16.mxu0 0
    %819 = vmatpush2.bf16.msra.mxu0 %v630
    %820 = vmatprep.subr.bf16.mxu0 0
    %821 = vmatpush2.bf16.msra.mxu0 %v629
    %822 = vmatprep.subr.bf16.mxu0 0
    %823 = vmatpush2.bf16.msra.mxu0 %v628
    %824 = vmatprep.subr.bf16.mxu0 0
    %825 = vmatpush2.bf16.msra.mxu0 %v627
    %826 = vmatprep.subr.bf16.mxu0 0
    %827 = vmatpush2.bf16.msra.mxu0 %v626
    %828 = vmatprep.mubr.bf16.mxu0 %v192
    %829 = vmatmul.mubr.bf16.gmra.mxu0 %v191
    %v830 = vpop.f32.mrf.mxu0
    %v831 = vadd.f32 %v790, %v830
    %v832 = vpop.f32.mrf.mxu0
    %v833 = vpop.f32.mrf.mxu0
    %v834 = vadd.f32 %v793, %v833
    %v835 = vpop.f32.mrf.mxu0
    %836 = vdwg.mxu0
    %837 = vmatprep.subr.bf16.mxu0 0
    %838 = vmatpush1.bf16.msra.mxu0 %v641
    %839 = vmatprep.subr.bf16.mxu0 0
    %840 = vmatpush1.bf16.msra.mxu0 %v640
    %841 = vmatprep.subr.bf16.mxu0 0
    %842 = vmatpush1.bf16.msra.mxu0 %v639
    %843 = vmatprep.subr.bf16.mxu0 0
    %844 = vmatpush1.bf16.msra.mxu0 %v638
    %845 = vmatprep.subr.bf16.mxu0 0
    %846 = vmatpush1.bf16.msra.mxu0 %v637
    %847 = vmatprep.subr.bf16.mxu0 0
    %848 = vmatpush1.bf16.msra.mxu0 %v636
    %849 = vmatprep.subr.bf16.mxu0 0
    %850 = vmatpush1.bf16.msra.mxu0 %v635
    %851 = vmatprep.subr.bf16.mxu0 0
    %852 = vmatpush1.bf16.msra.mxu0 %v634
    %853 = vmatprep.subr.bf16.mxu0 0
    %854 = vmatpush2.bf16.msra.mxu0 %v649
    %855 = vmatprep.subr.bf16.mxu0 0
    %856 = vmatpush2.bf16.msra.mxu0 %v648
    %857 = vmatprep.subr.bf16.mxu0 0
    %858 = vmatpush2.bf16.msra.mxu0 %v647
    %859 = vmatprep.subr.bf16.mxu0 0
    %860 = vmatpush2.bf16.msra.mxu0 %v646
    %861 = vmatprep.subr.bf16.mxu0 0
    %862 = vmatpush2.bf16.msra.mxu0 %v645
    %863 = vmatprep.subr.bf16.mxu0 0
    %864 = vmatpush2.bf16.msra.mxu0 %v644
    %865 = vmatprep.subr.bf16.mxu0 0
    %866 = vmatpush2.bf16.msra.mxu0 %v643
    %867 = vmatprep.subr.bf16.mxu0 0
    %868 = vmatpush2.bf16.msra.mxu0 %v642
    %869 = vmatprep.mubr.bf16.mxu0 %v194
    %870 = vmatmul.mubr.bf16.gmra.mxu0 %v193
    %v871 = vpop.f32.mrf.mxu0
    %v872 = vadd.f32 %v831, %v871
    %v873 = vpop.f32.mrf.mxu0
    %v874 = vpop.f32.mrf.mxu0
    %v875 = vadd.f32 %v834, %v874
    %v876 = vpop.f32.mrf.mxu0
    %877 = vdwg.mxu0
    %vm878 = vcmp.gt.f32.partialorder %v872, 0.0
    %vm879 = vcmp.gt.f32.partialorder %v875, 0.0
    %v880 = vld [vmem:[%s5] sm:$0x1]
    %v882 = vlaneseq
    %v883 = vshrl.u32 %v882, 7
    %v884 = vsub.s32 0, %v883
    %v885 = vrot.slane %v880, %v884
    %v887 = vsel %vm878, %v885, 0.0
    %v888 = vsel %vm879, %v885, 0.0
    %v889 = vld [vmem:[#allocation8] sm:$0xff]
    %v890 = vld [vmem:[#allocation8 + $0x8] sm:$0xff]
    %v891 = vld [vmem:[#allocation8 + $0x10] sm:$0xff]
    %v892 = vld [vmem:[#allocation8 + $0x18] sm:$0xff]
    %v893 = vld [vmem:[#allocation8 + $0x20] sm:$0xff]
    %v894 = vld [vmem:[#allocation8 + $0x28] sm:$0xff]
    %v895 = vld [vmem:[#allocation8 + $0x30] sm:$0xff]
    %v896 = vld [vmem:[#allocation8 + $0x38] sm:$0xff]
    %v897 = vld [vmem:[#allocation8 + $0x40] sm:$0xff]
    %v898 = vld [vmem:[#allocation8 + $0x48] sm:$0xff]
    %v899 = vld [vmem:[#allocation8 + $0x50] sm:$0xff]
    %v900 = vld [vmem:[#allocation8 + $0x58] sm:$0xff]
    %v901 = vld [vmem:[#allocation8 + $0x60] sm:$0xff]
    %v902 = vld [vmem:[#allocation8 + $0x68] sm:$0xff]
    %v903 = vld [vmem:[#allocation8 + $0x70] sm:$0xff]
    %v904 = vld [vmem:[#allocation8 + $0x78] sm:$0xff]
    %905 = vmatprep.subr.mxu0 0.0
    %906 = vmatpush1.msra.mxu0 %v904
    %907 = vmatprep.subr.mxu0 0.0
    %908 = vmatpush1.msra.mxu0 %v903
    %909 = vmatprep.subr.mxu0 0.0
    %910 = vmatpush1.msra.mxu0 %v902
    %911 = vmatprep.subr.mxu0 0.0
    %912 = vmatpush1.msra.mxu0 %v901
    %913 = vmatprep.subr.mxu0 0.0
    %914 = vmatpush1.msra.mxu0 %v900
    %915 = vmatprep.subr.mxu0 0.0
    %916 = vmatpush1.msra.mxu0 %v899
    %917 = vmatprep.subr.mxu0 0.0
    %918 = vmatpush1.msra.mxu0 %v898
    %919 = vmatprep.subr.mxu0 0.0
    %920 = vmatpush1.msra.mxu0 %v897
    %921 = vmatprep.subr.mxu0 0.0
    %922 = vmatpush1.msra.mxu0 %v896
    %923 = vmatprep.subr.mxu0 0.0
    %924 = vmatpush1.msra.mxu0 %v895
    %925 = vmatprep.subr.mxu0 0.0
    %926 = vmatpush1.msra.mxu0 %v894
    %927 = vmatprep.subr.mxu0 0.0
    %928 = vmatpush1.msra.mxu0 %v893
    %929 = vmatprep.subr.mxu0 0.0
    %930 = vmatpush1.msra.mxu0 %v892
    %931 = vmatprep.subr.mxu0 0.0
    %932 = vmatpush1.msra.mxu0 %v891
    %933 = vmatprep.subr.mxu0 0.0
    %934 = vmatpush1.msra.mxu0 %v890
    %935 = vmatprep.subr.mxu0 0.0
    %936 = vmatpush1.msra.mxu0 %v889
    %937 = vmatprep.subr.mxu0 0.0
    %938 = vmatpush2.msra.mxu0 0.0
    %939 = vmatprep.subr.mxu0 0.0
    %940 = vmatpush2.msra.mxu0 0.0
    %941 = vmatprep.subr.mxu0 0.0
    %942 = vmatpush2.msra.mxu0 0.0
    %943 = vmatprep.subr.mxu0 0.0
    %944 = vmatpush2.msra.mxu0 0.0
    %945 = vmatprep.subr.mxu0 0.0
    %946 = vmatpush2.msra.mxu0 0.0
    %947 = vmatprep.subr.mxu0 0.0
    %948 = vmatpush2.msra.mxu0 0.0
    %949 = vmatprep.subr.mxu0 0.0
    %950 = vmatpush2.msra.mxu0 0.0
    %951 = vmatprep.subr.mxu0 0.0
    %952 = vmatpush2.msra.mxu0 0.0
    %953 = vmatprep.subr.mxu0 0.0
    %954 = vmatpush2.msra.mxu0 0.0
    %955 = vmatprep.subr.mxu0 0.0
    %956 = vmatpush2.msra.mxu0 0.0
    %957 = vmatprep.subr.mxu0 0.0
    %958 = vmatpush2.msra.mxu0 0.0
    %959 = vmatprep.subr.mxu0 0.0
    %960 = vmatpush2.msra.mxu0 0.0
    %961 = vmatprep.subr.mxu0 0.0
    %962 = vmatpush2.msra.mxu0 0.0
    %963 = vmatprep.subr.mxu0 0.0
    %964 = vmatpush2.msra.mxu0 0.0
    %965 = vmatprep.subr.mxu0 0.0
    %966 = vmatpush2.msra.mxu0 0.0
    %967 = vmatprep.subr.mxu0 0.0
    %968 = vmatpush2.msra.mxu0 0.0
    %969 = vmatprep.mubr.f32.mxu0 0.0
    %970 = vmatmul.mubr.f32.gmra.mxu0 %v887
    %v971 = vpop.f32.mrf.mxu0
    %v972 = vadd.f32 0.0, %v971
    %v973 = vpop.f32.mrf.mxu0
    %974 = vmatprep.mubr.f32.mxu0 0.0
    %975 = vmatmul.mubr.f32.gmra.mxu0 %v888
    %v976 = vpop.f32.mrf.mxu0
    %v977 = vadd.f32 0.0, %v976
    %v978 = vpop.f32.mrf.mxu0
    %979 = vdwg.mxu0
    %v980 = vmul.f32 %v972, %v887
    %v981 = vmul.f32 %v977, %v888
    %982 = vadd.xlane.f32.xlu0 %v980
    %v983 = vpop.xlane.xlu0 %982
    %984 = vadd.xlane.f32.xlu0 %v981
    %v985 = vpop.xlane.xlu0 %984
    %v986 = vmax.f32 %v983, 0.0
    %v987 = vmax.f32 %v985, 0.0
    %v988 = vrsqrt.pop %v986
    %v989 = vmul.f32 %v986, %v988
    %vm990 = vcmp.eq.f32.partialorder %v986, inf
    %v991 = vsel %vm990, %v986, %v989
    %vm992 = vcmp.eq.f32.partialorder %v986, 0.0
    %v993 = vand.u32 %v986, 2147483648
    %v994 = vsel %vm992, %v993, %v991
    %v995 = vrsqrt.pop %v987
    %v996 = vmul.f32 %v987, %v995
    %vm997 = vcmp.eq.f32.partialorder %v987, inf
    %v998 = vsel %vm997, %v987, %v996
    %vm999 = vcmp.eq.f32.partialorder %v987, 0.0
    %v1000 = vand.u32 %v987, 2147483648
    %v1001 = vsel %vm999, %v1000, %v998
    %s1002 = smul.u32 0, 16
    %v1003 = vlaneseq
    %v1004 = vshrl.u32 %v1003, 7
    %v1005 = vadd.s32 %v1004, 8
    %v1006 = vstv %s1002
    %v1007 = vadd.s32 %v1006, %v1004
    %v1008 = vadd.s32 %v1006, %v1005
    %vm1009 = vcmp.lt.s32.totalorder %v1007, 2
    %vm1010 = vcmp.lt.s32.totalorder %v1008, 2
    %v1011 = vsub.f32 %v994, 1.0
    %v1012 = vsub.f32 %v1001, 1.0
    %v1013 = vmul.f32 %v1011, %v1011
    %v1014 = vmul.f32 %v1012, %v1012
    %v1015 = vsel %vm1009, %v1013, 0.0
    %v1016 = vsel %vm1010, %v1014, 0.0
    %vm1017 = vcmask 7168
    %v1018 = vsel %vm1017, %v1015, 0.0
    %v1019 = vsel %vm1017, %v1016, 0.0
    %v1020 = vadd.f32 %v1018, %v1019
    %1021 = vadd.xlane.f32.xlu0 %v1020
    %v1022 = vpop.xlane.xlu0 %1021
    %v1023 = vrot.slane %v1022, 4
    %v1024 = vadd.f32 %v1022, %v1023
    %v1025 = vrot.slane %v1024, 2
    %v1026 = vadd.f32 %v1024, %v1025
    %v1027 = vrot.slane %v1026, 1
    %v1028 = vadd.f32 %v1026, %v1027
    %s1029 = vtos %v1028
    %s1030 = scalar_lea.smem [#allocation10], 0
    %1031 = sst [smem:[%s1030]] %s1029
    // Predicated region
    $region46: #{tpu_custom_call.1} parent=1 // pred_check
      _
    $region47: #{tpu_custom_call.1} parent=1 // pred_check_branch
      %1033 = sbr.rel (0) target = $region49
    $region48: #{tpu_custom_call.1} parent=1 // pred_region
      %s1035 = ssub.s32 16, 16
      %1036 = vsyncadd [#allocation4], %s1035
      %1039 = dma.smem_to_hbm [#allocation10], 16, %s7, [#allocation4]
    $region49: #{tpu_custom_call.1} parent=1 // pred_fallthru
      _
    // Predicated region
    $region50: #{tpu_custom_call.1} parent=1 // pred_check
      _
    $region51: #{tpu_custom_call.1} parent=1 // pred_check_branch
      %1041 = sbr.rel (0) target = $region53
    $region52: #{tpu_custom_call.1} parent=1 // pred_region
      %1042 = dma.done [#allocation4], 16
    $region53: #{tpu_custom_call.1} parent=1 // pred_fallthru
      _
    %1043 = sfence
    %1044 = vsyncpa [#allocation3], 1
    %1045 = vsyncpa [#allocation6], 1
    %1046 = vsyncpa [#allocation9], 1
    %1047 = vsyncpa [#allocation4], 1

// kernel: tpu_custom_call.1
$region0: #{tpu_custom_call.1}
  #allocation0 [shape = 'u32[]', space=smem, size = 0x4, offset = 0x4, fixed_abs, tag = 'smem constant byte address 0x4 - core index']
  #allocation1 [shape = 'u32[144,128]{1,0:T(1,128)}', space=vmem, size = 0x12000, scoped, tag = 'internal scratch']
  %s0 = inlined_call_operand.vmem [shape: f32[16,1], index: 0, kind: input, shape index: {}]
  %s1 = inlined_call_operand.hbm [shape: f32[16,1024], index: 1, kind: input, shape index: {}]
  %s2 = inlined_call_operand.hbm [shape: f32[16,1024], index: 2, kind: input, shape index: {}]
  %s3 = inlined_call_operand.hbm [shape: bf16[1024,128], index: 3, kind: input, shape index: {}]
  %s4 = inlined_call_operand.vmem [shape: f32[1,128], index: 4, kind: input, shape index: {}]
  %s5 = inlined_call_operand.vmem [shape: f32[1,128], index: 5, kind: input, shape index: {}]
  %s6 = inlined_call_operand.hbm [shape: f32[128,128], index: 6, kind: input, shape index: {}]
  %s7 = inlined_call_operand.hbm [shape: f32[1,1], index: 7, kind: output, shape index: {}]
  %s8 = sld [smem:[#allocation0]]
  $region54: #{tpu_custom_call.1} parent=0
    _
  %s10 = ssub.s32 1, %s8
  %s11 = scalar_select 0, %s10, %s8
  $region1: #{tpu_custom_call.1} parent=0
    #allocation2 [shape = 'u8[65536]{0}', space=vmem, size = 0x10000, scoped, tag = 'input window, operand 1, single buffered']
    #allocation3 [shape = 's32[1]{0}', space=sflag, size = 0x4, scoped, tag = 'scoped memory for tpu_custom_call.1']
    #allocation4 [shape = 's32[1]{0}', space=sflag, size = 0x4, scoped, tag = 'scoped memory for tpu_custom_call.1']
    #allocation5 [shape = 'u8[65536]{0}', space=vmem, size = 0x10000, scoped, tag = 'input window, operand 2, single buffered']
    #allocation6 [shape = 's32[1]{0}', space=sflag, size = 0x4, scoped, tag = 'scoped memory for tpu_custom_call.1']
    #allocation7 [shape = 'u8[262144]{0}', space=vmem, size = 0x40000, scoped, tag = 'input window, operand 3, single buffered']
    #allocation8 [shape = 'u8[65536]{0}', space=vmem, size = 0x10000, scoped, tag = 'input window, operand 6, single buffered']
    #allocation9 [shape = 's32[1]{0}', space=sflag, size = 0x4, scoped, tag = 'scoped memory for tpu_custom_call.1']
    #allocation10 [shape = 'u8[512]{0}', space=smem, size = 0x200, scoped, tag = 'output window, operand 0, single buffered']
    %12 = vsyncpa [#allocation3], 0
    %13 = vsyncpa [#allocation6], 0
    %14 = vsyncpa [#allocation9], 0
    %15 = vsyncpa [#allocation4], 0
    // Predicated region
    $region2: #{tpu_custom_call.1} parent=1 // pred_check
      _
    $region3: #{tpu_custom_call.1} parent=1 // pred_check_branch
      %17 = sbr.rel (0) target = $region5
    $region4: #{tpu_custom_call.1} parent=1 // pred_region
      _
    $region5: #{tpu_custom_call.1} parent=1 // pred_fallthru
      _
    // Predicated region
    $region6: #{tpu_custom_call.1} parent=1 // pred_check
      _
    $region7: #{tpu_custom_call.1} parent=1 // pred_check_branch
      %19 = sbr.rel (0) target = $region9
    $region8: #{tpu_custom_call.1} parent=1 // pred_region
      %s21 = ssub.s32 2048, 2048
      %22 = vsyncadd [#allocation3], %s21
      %s23 = sshll.u32 [#allocation2], 4
      %s24 = int_to_ptr.vmem [resolvable:$true] %s23
      %29 = dma.hbm_to_vmem [thread:$0]  %s1, 2048, %s24, [#allocation3], 1024, 1024, 64
    $region9: #{tpu_custom_call.1} parent=1 // pred_fallthru
      _
    // Predicated region
    $region10: #{tpu_custom_call.1} parent=1 // pred_check
      _
    $region11: #{tpu_custom_call.1} parent=1 // pred_check_branch
      %31 = sbr.rel (0) target = $region13
    $region12: #{tpu_custom_call.1} parent=1 // pred_region
      %s33 = ssub.s32 2048, 2048
      %34 = vsyncadd [#allocation6], %s33
      %s35 = sshll.u32 [#allocation5], 4
      %s36 = int_to_ptr.vmem [resolvable:$true] %s35
      %41 = dma.hbm_to_vmem [thread:$0]  %s2, 2048, %s36, [#allocation6], 1024, 1024, 64
    $region13: #{tpu_custom_call.1} parent=1 // pred_fallthru
      _
    // Predicated region
    $region14: #{tpu_custom_call.1} parent=1 // pred_check
      _
    $region15: #{tpu_custom_call.1} parent=1 // pred_check_branch
      %43 = sbr.rel (0) target = $region17
    $region16: #{tpu_custom_call.1} parent=1 // pred_region
      %s45 = ssub.s32 8192, 8192
      %46 = vsyncadd [#allocation6], %s45
      %s47 = sshll.u32 [#allocation7], 4
      %s48 = int_to_ptr.vmem [resolvable:$true] %s47
      %53 = dma.hbm_to_vmem [thread:$0]  %s3, 8192, %s48, [#allocation6], 64, 64, 4
    $region17: #{tpu_custom_call.1} parent=1 // pred_fallthru
      _
    // Predicated region
    $region18: #{tpu_custom_call.1} parent=1 // pred_check
      _
    $region19: #{tpu_custom_call.1} parent=1 // pred_check_branch
      %55 = sbr.rel (0) target = $region21
    $region20: #{tpu_custom_call.1} parent=1 // pred_region
      _
    $region21: #{tpu_custom_call.1} parent=1 // pred_fallthru
      _
    // Predicated region
    $region22: #{tpu_custom_call.1} parent=1 // pred_check
      _
    $region23: #{tpu_custom_call.1} parent=1 // pred_check_branch
      %57 = sbr.rel (0) target = $region25
    $region24: #{tpu_custom_call.1} parent=1 // pred_region
      _
    $region25: #{tpu_custom_call.1} parent=1 // pred_fallthru
      _
    // Predicated region
    $region26: #{tpu_custom_call.1} parent=1 // pred_check
      _
    $region27: #{tpu_custom_call.1} parent=1 // pred_check_branch
      %59 = sbr.rel (0) target = $region29
    $region28: #{tpu_custom_call.1} parent=1 // pred_region
      %s61 = ssub.s32 2048, 2048
      %62 = vsyncadd [#allocation9], %s61
      %s63 = sshll.u32 [#allocation8], 4
      %s64 = int_to_ptr.vmem [resolvable:$true] %s63
      %69 = dma.hbm_to_vmem [thread:$0]  %s6, 2048, %s64, [#allocation9], 128, 128, 8
    $region29: #{tpu_custom_call.1} parent=1 // pred_fallthru
      _
    // Predicated region
    $region30: #{tpu_custom_call.1} parent=1 // pred_check
      _
    $region31: #{tpu_custom_call.1} parent=1 // pred_check_branch
      %71 = sbr.rel (0) target = $region33
    $region32: #{tpu_custom_call.1} parent=1 // pred_region
      %72 = dma.done [#allocation3], 2048
    $region33: #{tpu_custom_call.1} parent=1 // pred_fallthru
      _
    // Predicated region
    $region34: #{tpu_custom_call.1} parent=1 // pred_check
      _
    $region35: #{tpu_custom_call.1} parent=1 // pred_check_branch
      %74 = sbr.rel (0) target = $region37
    $region36: #{tpu_custom_call.1} parent=1 // pred_region
      %75 = dma.done [#allocation6], 2048
    $region37: #{tpu_custom_call.1} parent=1 // pred_fallthru
      _
    // Predicated region
    $region38: #{tpu_custom_call.1} parent=1 // pred_check
      _
    $region39: #{tpu_custom_call.1} parent=1 // pred_check_branch
      %77 = sbr.rel (0) target = $region41
    $region40: #{tpu_custom_call.1} parent=1 // pred_region
      %78 = dma.done [#allocation6], 8192
    $region41: #{tpu_custom_call.1} parent=1 // pred_fallthru
      _
    // Predicated region
    $region42: #{tpu_custom_call.1} parent=1 // pred_check
      _
    $region43: #{tpu_custom_call.1} parent=1 // pred_check_branch
      %80 = sbr.rel (0) target = $region45
    $region44: #{tpu_custom_call.1} parent=1 // pred_region
      %81 = dma.done [#allocation9], 2048
    $region45: #{tpu_custom_call.1} parent=1 // pred_fallthru
      _
    %v83 = vld [vmem:[%s0] sm:$0xff]
    %v84 = vld [vmem:[%s0 + $0x8] sm:$0xff]
    %v85 = vld [vmem:[#allocation2] sm:$0xff]
    %v86 = vld [vmem:[#allocation2 + $0x8] sm:$0xff]
    %v87 = vld [vmem:[#allocation2 + $0x10] sm:$0xff]
    %v88 = vld [vmem:[#allocation2 + $0x18] sm:$0xff]
    %v89 = vld [vmem:[#allocation2 + $0x20] sm:$0xff]
    %v90 = vld [vmem:[#allocation2 + $0x28] sm:$0xff]
    %v91 = vld [vmem:[#allocation2 + $0x30] sm:$0xff]
    %v92 = vld [vmem:[#allocation2 + $0x38] sm:$0xff]
    %v93 = vld [vmem:[#allocation2 + $0x40] sm:$0xff]
    %v94 = vld [vmem:[#allocation2 + $0x48] sm:$0xff]
    %v95 = vld [vmem:[#allocation2 + $0x50] sm:$0xff]
    %v96 = vld [vmem:[#allocation2 + $0x58] sm:$0xff]
    %v97 = vld [vmem:[#allocation2 + $0x60] sm:$0xff]
    %v98 = vld [vmem:[#allocation2 + $0x68] sm:$0xff]
    %v99 = vld [vmem:[#allocation2 + $0x70] sm:$0xff]
    %v100 = vld [vmem:[#allocation2 + $0x78] sm:$0xff]
    %102 = vset.pattern.permute.xlu0 0
    %103 = vperm.xlu0 %102, %v83
    %v104 = vpop.permute.xlu0 %103
    %107 = vset.pattern.permute.xlu0 0
    %108 = vperm.xlu0 %107, %v84
    %v109 = vpop.permute.xlu0 %108
    %v111 = vmul.f32 %v104, %v85
    %v112 = vmul.f32 %v104, %v86
    %v113 = vmul.f32 %v104, %v87
    %v114 = vmul.f32 %v104, %v88
    %v115 = vmul.f32 %v104, %v89
    %v116 = vmul.f32 %v104, %v90
    %v117 = vmul.f32 %v104, %v91
    %v118 = vmul.f32 %v104, %v92
    %v119 = vmul.f32 %v109, %v93
    %v120 = vmul.f32 %v109, %v94
    %v121 = vmul.f32 %v109, %v95
    %v122 = vmul.f32 %v109, %v96
    %v123 = vmul.f32 %v109, %v97
    %v124 = vmul.f32 %v109, %v98
    %v125 = vmul.f32 %v109, %v99
    %v126 = vmul.f32 %v109, %v100
    %v127 = vsub.f32 1.0, %v83
    %v128 = vsub.f32 1.0, %v84
    %v129 = vld [vmem:[#allocation5] sm:$0xff]
    %v130 = vld [vmem:[#allocation5 + $0x8] sm:$0xff]
    %v131 = vld [vmem:[#allocation5 + $0x10] sm:$0xff]
    %v132 = vld [vmem:[#allocation5 + $0x18] sm:$0xff]
    %v133 = vld [vmem:[#allocation5 + $0x20] sm:$0xff]
    %v134 = vld [vmem:[#allocation5 + $0x28] sm:$0xff]
    %v135 = vld [vmem:[#allocation5 + $0x30] sm:$0xff]
    %v136 = vld [vmem:[#allocation5 + $0x38] sm:$0xff]
    %v137 = vld [vmem:[#allocation5 + $0x40] sm:$0xff]
    %v138 = vld [vmem:[#allocation5 + $0x48] sm:$0xff]
    %v139 = vld [vmem:[#allocation5 + $0x50] sm:$0xff]
    %v140 = vld [vmem:[#allocation5 + $0x58] sm:$0xff]
    %v141 = vld [vmem:[#allocation5 + $0x60] sm:$0xff]
    %v142 = vld [vmem:[#allocation5 + $0x68] sm:$0xff]
    %v143 = vld [vmem:[#allocation5 + $0x70] sm:$0xff]
    %v144 = vld [vmem:[#allocation5 + $0x78] sm:$0xff]
    %146 = vset.pattern.permute.xlu0 0
    %147 = vperm.xlu0 %146, %v127
    %v148 = vpop.permute.xlu0 %147
    %151 = vset.pattern.permute.xlu0 0
    %152 = vperm.xlu0 %151, %v128
    %v153 = vpop.permute.xlu0 %152
    %v155 = vmul.f32 %v148, %v129
    %v156 = vmul.f32 %v148, %v130
    %v157 = vmul.f32 %v148, %v131
    %v158 = vmul.f32 %v148, %v132
    %v159 = vmul.f32 %v148, %v133
    %v160 = vmul.f32 %v148, %v134
    %v161 = vmul.f32 %v148, %v135
    %v162 = vmul.f32 %v148, %v136
    %v163 = vmul.f32 %v153, %v137
    %v164 = vmul.f32 %v153, %v138
    %v165 = vmul.f32 %v153, %v139
    %v166 = vmul.f32 %v153, %v140
    %v167 = vmul.f32 %v153, %v141
    %v168 = vmul.f32 %v153, %v142
    %v169 = vmul.f32 %v153, %v143
    %v170 = vmul.f32 %v153, %v144
    %v171 = vadd.f32 %v111, %v155
    %v172 = vadd.f32 %v112, %v156
    %v173 = vadd.f32 %v113, %v157
    %v174 = vadd.f32 %v114, %v158
    %v175 = vadd.f32 %v115, %v159
    %v176 = vadd.f32 %v116, %v160
    %v177 = vadd.f32 %v117, %v161
    %v178 = vadd.f32 %v118, %v162
    %v179 = vadd.f32 %v119, %v163
    %v180 = vadd.f32 %v120, %v164
    %v181 = vadd.f32 %v121, %v165
    %v182 = vadd.f32 %v122, %v166
    %v183 = vadd.f32 %v123, %v167
    %v184 = vadd.f32 %v124, %v168
    %v185 = vadd.f32 %v125, %v169
    %v186 = vadd.f32 %v126, %v170
    %v187 = vpack.c.bf16 %v179, %v171
    %v188 = vpack.c.bf16 %v180, %v172
    %v189 = vpack.c.bf16 %v181, %v173
    %v190 = vpack.c.bf16 %v182, %v174
    %v191 = vpack.c.bf16 %v183, %v175
    %v192 = vpack.c.bf16 %v184, %v176
    %v193 = vpack.c.bf16 %v185, %v177
    %v194 = vpack.c.bf16 %v186, %v178
    %v195 = vld [vmem:[#allocation7] sm:$0xf]
    %v196 = vld [vmem:[#allocation7 + $0x4] sm:$0xf]
    %v197 = vld [vmem:[#allocation7 + $0x8] sm:$0xf]
    %v198 = vld [vmem:[#allocation7 + $0xc] sm:$0xf]
    %v199 = vld [vmem:[#allocation7 + $0x10] sm:$0xf]
    %v200 = vld [vmem:[#allocation7 + $0x14] sm:$0xf]
    %v201 = vld [vmem:[#allocation7 + $0x18] sm:$0xf]
    %v202 = vld [vmem:[#allocation7 + $0x1c] sm:$0xf]
    %v203 = vld [vmem:[#allocation7 + $0x20] sm:$0xf]
    %v204 = vld [vmem:[#allocation7 + $0x24] sm:$0xf]
    %v205 = vld [vmem:[#allocation7 + $0x28] sm:$0xf]
    %v206 = vld [vmem:[#allocation7 + $0x2c] sm:$0xf]
    %v207 = vld [vmem:[#allocation7 + $0x30] sm:$0xf]
    %v208 = vld [vmem:[#allocation7 + $0x34] sm:$0xf]
    %v209 = vld [vmem:[#allocation7 + $0x38] sm:$0xf]
    %v210 = vld [vmem:[#allocation7 + $0x3c] sm:$0xf]
    %v211 = vld [vmem:[#allocation7 + $0x40] sm:$0xf]
    %v212 = vld [vmem:[#allocation7 + $0x44] sm:$0xf]
    %v213 = vld [vmem:[#allocation7 + $0x48] sm:$0xf]
    %v214 = vld [vmem:[#allocation7 + $0x4c] sm:$0xf]
    %v215 = vld [vmem:[#allocation7 + $0x50] sm:$0xf]
    %v216 = vld [vmem:[#allocation7 + $0x54] sm:$0xf]
    %v217 = vld [vmem:[#allocation7 + $0x58] sm:$0xf]
    %v218 = vld [vmem:[#allocation7 + $0x5c] sm:$0xf]
    %v219 = vld [vmem:[#allocation7 + $0x60] sm:$0xf]
    %v220 = vld [vmem:[#allocation7 + $0x64] sm:$0xf]
    %v221 = vld [vmem:[#allocation7 + $0x68] sm:$0xf]
    %v222 = vld [vmem:[#allocation7 + $0x6c] sm:$0xf]
    %v223 = vld [vmem:[#allocation7 + $0x70] sm:$0xf]
    %v224 = vld [vmem:[#allocation7 + $0x74] sm:$0xf]
    %v225 = vld [vmem:[#allocation7 + $0x78] sm:$0xf]
    %v226 = vld [vmem:[#allocation7 + $0x7c] sm:$0xf]
    %v227 = vld [vmem:[#allocation7 + $0x80] sm:$0xf]
    %v228 = vld [vmem:[#allocation7 + $0x84] sm:$0xf]
    %v229 = vld [vmem:[#allocation7 + $0x88] sm:$0xf]
    %v230 = vld [vmem:[#allocation7 + $0x8c] sm:$0xf]
    %v231 = vld [vmem:[#allocation7 + $0x90] sm:$0xf]
    %v232 = vld [vmem:[#allocation7 + $0x94] sm:$0xf]
    %v233 = vld [vmem:[#allocation7 + $0x98] sm:$0xf]
    %v234 = vld [vmem:[#allocation7 + $0x9c] sm:$0xf]
    %v235 = vld [vmem:[#allocation7 + $0xa0] sm:$0xf]
    %v236 = vld [vmem:[#allocation7 + $0xa4] sm:$0xf]
    %v237 = vld [vmem:[#allocation7 + $0xa8] sm:$0xf]
    %v238 = vld [vmem:[#allocation7 + $0xac] sm:$0xf]
    %v239 = vld [vmem:[#allocation7 + $0xb0] sm:$0xf]
    %v240 = vld [vmem:[#allocation7 + $0xb4] sm:$0xf]
    %v241 = vld [vmem:[#allocation7 + $0xb8] sm:$0xf]
    %v242 = vld [vmem:[#allocation7 + $0xbc] sm:$0xf]
    %v243 = vld [vmem:[#allocation7 + $0xc0] sm:$0xf]
    %v244 = vld [vmem:[#allocation7 + $0xc4] sm:$0xf]
    %v245 = vld [vmem:[#allocation7 + $0xc8] sm:$0xf]
    %v246 = vld [vmem:[#allocation7 + $0xcc] sm:$0xf]
    %v247 = vld [vmem:[#allocation7 + $0xd0] sm:$0xf]
    %v248 = vld [vmem:[#allocation7 + $0xd4] sm:$0xf]
    %v249 = vld [vmem:[#allocation7 + $0xd8] sm:$0xf]
    %v250 = vld [vmem:[#allocation7 + $0xdc] sm:$0xf]
    %v251 = vld [vmem:[#allocation7 + $0xe0] sm:$0xf]
    %v252 = vld [vmem:[#allocation7 + $0xe4] sm:$0xf]
    %v253 = vld [vmem:[#allocation7 + $0xe8] sm:$0xf]
    %v254 = vld [vmem:[#allocation7 + $0xec] sm:$0xf]
    %v255 = vld [vmem:[#allocation7 + $0xf0] sm:$0xf]
    %v256 = vld [vmem:[#allocation7 + $0xf4] sm:$0xf]
    %v257 = vld [vmem:[#allocation7 + $0xf8] sm:$0xf]
    %v258 = vld [vmem:[#allocation7 + $0xfc] sm:$0xf]
    %v259 = vld [vmem:[#allocation7 + $0x100] sm:$0xf]
    %v260 = vld [vmem:[#allocation7 + $0x104] sm:$0xf]
    %v261 = vld [vmem:[#allocation7 + $0x108] sm:$0xf]
    %v262 = vld [vmem:[#allocation7 + $0x10c] sm:$0xf]
    %v263 = vld [vmem:[#allocation7 + $0x110] sm:$0xf]
    %v264 = vld [vmem:[#allocation7 + $0x114] sm:$0xf]
    %v265 = vld [vmem:[#allocation7 + $0x118] sm:$0xf]
    %v266 = vld [vmem:[#allocation7 + $0x11c] sm:$0xf]
    %v267 = vld [vmem:[#allocation7 + $0x120] sm:$0xf]
    %v268 = vld [vmem:[#allocation7 + $0x124] sm:$0xf]
    %v269 = vld [vmem:[#allocation7 + $0x128] sm:$0xf]
    %v270 = vld [vmem:[#allocation7 + $0x12c] sm:$0xf]
    %v271 = vld [vmem:[#allocation7 + $0x130] sm:$0xf]
    %v272 = vld [vmem:[#allocation7 + $0x134] sm:$0xf]
    %v273 = vld [vmem:[#allocation7 + $0x138] sm:$0xf]
    %v274 = vld [vmem:[#allocation7 + $0x13c] sm:$0xf]
    %v275 = vld [vmem:[#allocation7 + $0x140] sm:$0xf]
    %v276 = vld [vmem:[#allocation7 + $0x144] sm:$0xf]
    %v277 = vld [vmem:[#allocation7 + $0x148] sm:$0xf]
    %v278 = vld [vmem:[#allocation7 + $0x14c] sm:$0xf]
    %v279 = vld [vmem:[#allocation7 + $0x150] sm:$0xf]
    %v280 = vld [vmem:[#allocation7 + $0x154] sm:$0xf]
    %v281 = vld [vmem:[#allocation7 + $0x158] sm:$0xf]
    %v282 = vld [vmem:[#allocation7 + $0x15c] sm:$0xf]
    %v283 = vld [vmem:[#allocation7 + $0x160] sm:$0xf]
    %v284 = vld [vmem:[#allocation7 + $0x164] sm:$0xf]
    %v285 = vld [vmem:[#allocation7 + $0x168] sm:$0xf]
    %v286 = vld [vmem:[#allocation7 + $0x16c] sm:$0xf]
    %v287 = vld [vmem:[#allocation7 + $0x170] sm:$0xf]
    %v288 = vld [vmem:[#allocation7 + $0x174] sm:$0xf]
    %v289 = vld [vmem:[#allocation7 + $0x178] sm:$0xf]
    %v290 = vld [vmem:[#allocation7 + $0x17c] sm:$0xf]
    %v291 = vld [vmem:[#allocation7 + $0x180] sm:$0xf]
    %v292 = vld [vmem:[#allocation7 + $0x184] sm:$0xf]
    %v293 = vld [vmem:[#allocation7 + $0x188] sm:$0xf]
    %v294 = vld [vmem:[#allocation7 + $0x18c] sm:$0xf]
    %v295 = vld [vmem:[#allocation7 + $0x190] sm:$0xf]
    %v296 = vld [vmem:[#allocation7 + $0x194] sm:$0xf]
    %v297 = vld [vmem:[#allocation7 + $0x198] sm:$0xf]
    %v298 = vld [vmem:[#allocation7 + $0x19c] sm:$0xf]
    %v299 = vld [vmem:[#allocation7 + $0x1a0] sm:$0xf]
    %v300 = vld [vmem:[#allocation7 + $0x1a4] sm:$0xf]
    %v301 = vld [vmem:[#allocation7 + $0x1a8] sm:$0xf]
    %v302 = vld [vmem:[#allocation7 + $0x1ac] sm:$0xf]
    %v303 = vld [vmem:[#allocation7 + $0x1b0] sm:$0xf]
    %v304 = vld [vmem:[#allocation7 + $0x1b4] sm:$0xf]
    %v305 = vld [vmem:[#allocation7 + $0x1b8] sm:$0xf]
    %v306 = vld [vmem:[#allocation7 + $0x1bc] sm:$0xf]
    %v307 = vld [vmem:[#allocation7 + $0x1c0] sm:$0xf]
    %v308 = vld [vmem:[#allocation7 + $0x1c4] sm:$0xf]
    %v309 = vld [vmem:[#allocation7 + $0x1c8] sm:$0xf]
    %v310 = vld [vmem:[#allocation7 + $0x1cc] sm:$0xf]
    %v311 = vld [vmem:[#allocation7 + $0x1d0] sm:$0xf]
    %v312 = vld [vmem:[#allocation7 + $0x1d4] sm:$0xf]
    %v313 = vld [vmem:[#allocation7 + $0x1d8] sm:$0xf]
    %v314 = vld [vmem:[#allocation7 + $0x1dc] sm:$0xf]
    %v315 = vld [vmem:[#allocation7 + $0x1e0] sm:$0xf]
    %v316 = vld [vmem:[#allocation7 + $0x1e4] sm:$0xf]
    %v317 = vld [vmem:[#allocation7 + $0x1e8] sm:$0xf]
    %v318 = vld [vmem:[#allocation7 + $0x1ec] sm:$0xf]
    %v319 = vld [vmem:[#allocation7 + $0x1f0] sm:$0xf]
    %v320 = vld [vmem:[#allocation7 + $0x1f4] sm:$0xf]
    %v321 = vld [vmem:[#allocation7 + $0x1f8] sm:$0xf]
    %v322 = vld [vmem:[#allocation7 + $0x1fc] sm:$0xf]
    %v323 = vld [vmem:[%s4] sm:$0x1]
    %v325 = vlaneseq
    %v326 = vshrl.u32 %v325, 7
    %v327 = vsub.s32 0, %v326
    %v328 = vrot.slane %v323, %v327
    %v458 = vunpack.c.l.b16 %v195
    %v459 = vunpack.c.l.b16 %v196
    %v460 = vunpack.c.l.b16 %v197
    %v461 = vunpack.c.l.b16 %v198
    %v462 = vunpack.c.l.b16 %v199
    %v463 = vunpack.c.l.b16 %v200
    %v464 = vunpack.c.l.b16 %v201
    %v465 = vunpack.c.l.b16 %v202
    %v466 = vunpack.c.l.b16 %v203
    %v467 = vunpack.c.l.b16 %v204
    %v468 = vunpack.c.l.b16 %v205
    %v469 = vunpack.c.l.b16 %v206
    %v470 = vunpack.c.l.b16 %v207
    %v471 = vunpack.c.l.b16 %v208
    %v472 = vunpack.c.l.b16 %v209
    %v473 = vunpack.c.l.b16 %v210
    %v474 = vunpack.c.l.b16 %v211
    %v475 = vunpack.c.l.b16 %v212
    %v476 = vunpack.c.l.b16 %v213
    %v477 = vunpack.c.l.b16 %v214
    %v478 = vunpack.c.l.b16 %v215
    %v479 = vunpack.c.l.b16 %v216
    %v480 = vunpack.c.l.b16 %v217
    %v481 = vunpack.c.l.b16 %v218
    %v482 = vunpack.c.l.b16 %v219
    %v483 = vunpack.c.l.b16 %v220
    %v484 = vunpack.c.l.b16 %v221
    %v485 = vunpack.c.l.b16 %v222
    %v486 = vunpack.c.l.b16 %v223
    %v487 = vunpack.c.l.b16 %v224
    %v488 = vunpack.c.l.b16 %v225
    %v489 = vunpack.c.l.b16 %v226
    %v490 = vunpack.c.l.b16 %v227
    %v491 = vunpack.c.l.b16 %v228
    %v492 = vunpack.c.l.b16 %v229
    %v493 = vunpack.c.l.b16 %v230
    %v494 = vunpack.c.l.b16 %v231
    %v495 = vunpack.c.l.b16 %v232
    %v496 = vunpack.c.l.b16 %v233
    %v497 = vunpack.c.l.b16 %v234
    %v498 = vunpack.c.l.b16 %v235
    %v499 = vunpack.c.l.b16 %v236
    %v500 = vunpack.c.l.b16 %v237
    %v501 = vunpack.c.l.b16 %v238
    %v502 = vunpack.c.l.b16 %v239
    %v503 = vunpack.c.l.b16 %v240
    %v504 = vunpack.c.l.b16 %v241
    %v505 = vunpack.c.l.b16 %v242
    %v506 = vunpack.c.l.b16 %v243
    %v507 = vunpack.c.l.b16 %v244
    %v508 = vunpack.c.l.b16 %v245
    %v509 = vunpack.c.l.b16 %v246
    %v510 = vunpack.c.l.b16 %v247
    %v511 = vunpack.c.l.b16 %v248
    %v512 = vunpack.c.l.b16 %v249
    %v513 = vunpack.c.l.b16 %v250
    %v514 = vunpack.c.l.b16 %v251
    %v515 = vunpack.c.l.b16 %v252
    %v516 = vunpack.c.l.b16 %v253
    %v517 = vunpack.c.l.b16 %v254
    %v518 = vunpack.c.l.b16 %v255
    %v519 = vunpack.c.l.b16 %v256
    %v520 = vunpack.c.l.b16 %v257
    %v521 = vunpack.c.l.b16 %v258
    %v522 = vunpack.c.l.b16 %v259
    %v523 = vunpack.c.l.b16 %v260
    %v524 = vunpack.c.l.b16 %v261
    %v525 = vunpack.c.l.b16 %v262
    %v526 = vunpack.c.l.b16 %v263
    %v527 = vunpack.c.l.b16 %v264
    %v528 = vunpack.c.l.b16 %v265
    %v529 = vunpack.c.l.b16 %v266
    %v530 = vunpack.c.l.b16 %v267
    %v531 = vunpack.c.l.b16 %v268
    %v532 = vunpack.c.l.b16 %v269
    %v533 = vunpack.c.l.b16 %v270
    %v534 = vunpack.c.l.b16 %v271
    %v535 = vunpack.c.l.b16 %v272
    %v536 = vunpack.c.l.b16 %v273
    %v537 = vunpack.c.l.b16 %v274
    %v538 = vunpack.c.l.b16 %v275
    %v539 = vunpack.c.l.b16 %v276
    %v540 = vunpack.c.l.b16 %v277
    %v541 = vunpack.c.l.b16 %v278
    %v542 = vunpack.c.l.b16 %v279
    %v543 = vunpack.c.l.b16 %v280
    %v544 = vunpack.c.l.b16 %v281
    %v545 = vunpack.c.l.b16 %v282
    %v546 = vunpack.c.l.b16 %v283
    %v547 = vunpack.c.l.b16 %v284
    %v548 = vunpack.c.l.b16 %v285
    %v549 = vunpack.c.l.b16 %v286
    %v550 = vunpack.c.l.b16 %v287
    %v551 = vunpack.c.l.b16 %v288
    %v552 = vunpack.c.l.b16 %v289
    %v553 = vunpack.c.l.b16 %v290
    %v554 = vunpack.c.l.b16 %v291
    %v555 = vunpack.c.l.b16 %v292
    %v556 = vunpack.c.l.b16 %v293
    %v557 = vunpack.c.l.b16 %v294
    %v558 = vunpack.c.l.b16 %v295
    %v559 = vunpack.c.l.b16 %v296
    %v560 = vunpack.c.l.b16 %v297
    %v561 = vunpack.c.l.b16 %v298
    %v562 = vunpack.c.l.b16 %v299
    %v563 = vunpack.c.l.b16 %v300
    %v564 = vunpack.c.l.b16 %v301
    %v565 = vunpack.c.l.b16 %v302
    %v566 = vunpack.c.l.b16 %v303
    %v567 = vunpack.c.l.b16 %v304
    %v568 = vunpack.c.l.b16 %v305
    %v569 = vunpack.c.l.b16 %v306
    %v570 = vunpack.c.l.b16 %v307
    %v571 = vunpack.c.l.b16 %v308
    %v572 = vunpack.c.l.b16 %v309
    %v573 = vunpack.c.l.b16 %v310
    %v574 = vunpack.c.l.b16 %v311
    %v575 = vunpack.c.l.b16 %v312
    %v576 = vunpack.c.l.b16 %v313
    %v577 = vunpack.c.l.b16 %v314
    %v578 = vunpack.c.l.b16 %v315
    %v579 = vunpack.c.l.b16 %v316
    %v580 = vunpack.c.l.b16 %v317
    %v581 = vunpack.c.l.b16 %v318
    %v582 = vunpack.c.l.b16 %v319
    %v583 = vunpack.c.l.b16 %v320
    %v584 = vunpack.c.l.b16 %v321
    %v585 = vunpack.c.l.b16 %v322
    %v586 = vpack.c.b16 %v459, %v458
    %v587 = vpack.c.b16 %v461, %v460
    %v588 = vpack.c.b16 %v463, %v462
    %v589 = vpack.c.b16 %v465, %v464
    %v590 = vpack.c.b16 %v467, %v466
    %v591 = vpack.c.b16 %v469, %v468
    %v592 = vpack.c.b16 %v471, %v470
    %v593 = vpack.c.b16 %v473, %v472
    %v594 = vpack.c.b16 %v475, %v474
    %v595 = vpack.c.b16 %v477, %v476
    %v596 = vpack.c.b16 %v479, %v478
    %v597 = vpack.c.b16 %v481, %v480
    %v598 = vpack.c.b16 %v483, %v482
    %v599 = vpack.c.b16 %v485, %v484
    %v600 = vpack.c.b16 %v487, %v486
    %v601 = vpack.c.b16 %v489, %v488
    %v602 = vpack.c.b16 %v491, %v490
    %v603 = vpack.c.b16 %v493, %v492
    %v604 = vpack.c.b16 %v495, %v494
    %v605 = vpack.c.b16 %v497, %v496
    %v606 = vpack.c.b16 %v499, %v498
    %v607 = vpack.c.b16 %v501, %v500
    %v608 = vpack.c.b16 %v503, %v502
    %v609 = vpack.c.b16 %v505, %v504
    %v610 = vpack.c.b16 %v507, %v506
    %v611 = vpack.c.b16 %v509, %v508
    %v612 = vpack.c.b16 %v511, %v510
    %v613 = vpack.c.b16 %v513, %v512
    %v614 = vpack.c.b16 %v515, %v514
    %v615 = vpack.c.b16 %v517, %v516
    %v616 = vpack.c.b16 %v519, %v518
    %v617 = vpack.c.b16 %v521, %v520
    %v618 = vpack.c.b16 %v523, %v522
    %v619 = vpack.c.b16 %v525, %v524
    %v620 = vpack.c.b16 %v527, %v526
    %v621 = vpack.c.b16 %v529, %v528
    %v622 = vpack.c.b16 %v531, %v530
    %v623 = vpack.c.b16 %v533, %v532
    %v624 = vpack.c.b16 %v535, %v534
    %v625 = vpack.c.b16 %v537, %v536
    %v626 = vpack.c.b16 %v539, %v538
    %v627 = vpack.c.b16 %v541, %v540
    %v628 = vpack.c.b16 %v543, %v542
    %v629 = vpack.c.b16 %v545, %v544
    %v630 = vpack.c.b16 %v547, %v546
    %v631 = vpack.c.b16 %v549, %v548
    %v632 = vpack.c.b16 %v551, %v550
    %v633 = vpack.c.b16 %v553, %v552
    %v634 = vpack.c.b16 %v555, %v554
    %v635 = vpack.c.b16 %v557, %v556
    %v636 = vpack.c.b16 %v559, %v558
    %v637 = vpack.c.b16 %v561, %v560
    %v638 = vpack.c.b16 %v563, %v562
    %v639 = vpack.c.b16 %v565, %v564
    %v640 = vpack.c.b16 %v567, %v566
    %v641 = vpack.c.b16 %v569, %v568
    %v642 = vpack.c.b16 %v571, %v570
    %v643 = vpack.c.b16 %v573, %v572
    %v644 = vpack.c.b16 %v575, %v574
    %v645 = vpack.c.b16 %v577, %v576
    %v646 = vpack.c.b16 %v579, %v578
    %v647 = vpack.c.b16 %v581, %v580
    %v648 = vpack.c.b16 %v583, %v582
    %v649 = vpack.c.b16 %v585, %v584
    %714 = vmatprep.subr.bf16.mxu0 0
    %715 = vmatpush1.bf16.msra.mxu0 %v593
    %716 = vmatprep.subr.bf16.mxu0 0
    %717 = vmatpush1.bf16.msra.mxu0 %v592
    %718 = vmatprep.subr.bf16.mxu0 0
    %719 = vmatpush1.bf16.msra.mxu0 %v591
    %720 = vmatprep.subr.bf16.mxu0 0
    %721 = vmatpush1.bf16.msra.mxu0 %v590
    %722 = vmatprep.subr.bf16.mxu0 0
    %723 = vmatpush1.bf16.msra.mxu0 %v589
    %724 = vmatprep.subr.bf16.mxu0 0
    %725 = vmatpush1.bf16.msra.mxu0 %v588
    %726 = vmatprep.subr.bf16.mxu0 0
    %727 = vmatpush1.bf16.msra.mxu0 %v587
    %728 = vmatprep.subr.bf16.mxu0 0
    %729 = vmatpush1.bf16.msra.mxu0 %v586
    %730 = vmatprep.subr.bf16.mxu0 0
    %731 = vmatpush2.bf16.msra.mxu0 %v601
    %732 = vmatprep.subr.bf16.mxu0 0
    %733 = vmatpush2.bf16.msra.mxu0 %v600
    %734 = vmatprep.subr.bf16.mxu0 0
    %735 = vmatpush2.bf16.msra.mxu0 %v599
    %736 = vmatprep.subr.bf16.mxu0 0
    %737 = vmatpush2.bf16.msra.mxu0 %v598
    %738 = vmatprep.subr.bf16.mxu0 0
    %739 = vmatpush2.bf16.msra.mxu0 %v597
    %740 = vmatprep.subr.bf16.mxu0 0
    %741 = vmatpush2.bf16.msra.mxu0 %v596
    %742 = vmatprep.subr.bf16.mxu0 0
    %743 = vmatpush2.bf16.msra.mxu0 %v595
    %744 = vmatprep.subr.bf16.mxu0 0
    %745 = vmatpush2.bf16.msra.mxu0 %v594
    %746 = vmatprep.mubr.bf16.mxu0 %v188
    %747 = vmatmul.mubr.bf16.gmra.mxu0 %v187
    %v748 = vpop.f32.mrf.mxu0
    %v749 = vadd.f32 %v328, %v748
    %v750 = vpop.f32.mrf.mxu0
    %v751 = vpop.f32.mrf.mxu0
    %v752 = vadd.f32 %v328, %v751
    %v753 = vpop.f32.mrf.mxu0
    %754 = vdwg.mxu0
    %755 = vmatprep.subr.bf16.mxu0 0
    %756 = vmatpush1.bf16.msra.mxu0 %v609
    %757 = vmatprep.subr.bf16.mxu0 0
    %758 = vmatpush1.bf16.msra.mxu0 %v608
    %759 = vmatprep.subr.bf16.mxu0 0
    %760 = vmatpush1.bf16.msra.mxu0 %v607
    %761 = vmatprep.subr.bf16.mxu0 0
    %762 = vmatpush1.bf16.msra.mxu0 %v606
    %763 = vmatprep.subr.bf16.mxu0 0
    %764 = vmatpush1.bf16.msra.mxu0 %v605
    %765 = vmatprep.subr.bf16.mxu0 0
    %766 = vmatpush1.bf16.msra.mxu0 %v604
    %767 = vmatprep.subr.bf16.mxu0 0
    %768 = vmatpush1.bf16.msra.mxu0 %v603
    %769 = vmatprep.subr.bf16.mxu0 0
    %770 = vmatpush1.bf16.msra.mxu0 %v602
    %771 = vmatprep.subr.bf16.mxu0 0
    %772 = vmatpush2.bf16.msra.mxu0 %v617
    %773 = vmatprep.subr.bf16.mxu0 0
    %774 = vmatpush2.bf16.msra.mxu0 %v616
    %775 = vmatprep.subr.bf16.mxu0 0
    %776 = vmatpush2.bf16.msra.mxu0 %v615
    %777 = vmatprep.subr.bf16.mxu0 0
    %778 = vmatpush2.bf16.msra.mxu0 %v614
    %779 = vmatprep.subr.bf16.mxu0 0
    %780 = vmatpush2.bf16.msra.mxu0 %v613
    %781 = vmatprep.subr.bf16.mxu0 0
    %782 = vmatpush2.bf16.msra.mxu0 %v612
    %783 = vmatprep.subr.bf16.mxu0 0
    %784 = vmatpush2.bf16.msra.mxu0 %v611
    %785 = vmatprep.subr.bf16.mxu0 0
    %786 = vmatpush2.bf16.msra.mxu0 %v610
    %787 = vmatprep.mubr.bf16.mxu0 %v190
    %788 = vmatmul.mubr.bf16.gmra.mxu0 %v189
    %v789 = vpop.f32.mrf.mxu0
    %v790 = vadd.f32 %v749, %v789
    %v791 = vpop.f32.mrf.mxu0
    %v792 = vpop.f32.mrf.mxu0
    %v793 = vadd.f32 %v752, %v792
    %v794 = vpop.f32.mrf.mxu0
    %795 = vdwg.mxu0
    %796 = vmatprep.subr.bf16.mxu0 0
    %797 = vmatpush1.bf16.msra.mxu0 %v625
    %798 = vmatprep.subr.bf16.mxu0 0
    %799 = vmatpush1.bf16.msra.mxu0 %v624
    %800 = vmatprep.subr.bf16.mxu0 0
    %801 = vmatpush1.bf16.msra.mxu0 %v623
    %802 = vmatprep.subr.bf16.mxu0 0
    %803 = vmatpush1.bf16.msra.mxu0 %v622
    %804 = vmatprep.subr.bf16.mxu0 0
    %805 = vmatpush1.bf16.msra.mxu0 %v621
    %806 = vmatprep.subr.bf16.mxu0 0
    %807 = vmatpush1.bf16.msra.mxu0 %v620
    %808 = vmatprep.subr.bf16.mxu0 0
    %809 = vmatpush1.bf16.msra.mxu0 %v619
    %810 = vmatprep.subr.bf16.mxu0 0
    %811 = vmatpush1.bf16.msra.mxu0 %v618
    %812 = vmatprep.subr.bf16.mxu0 0
    %813 = vmatpush2.bf16.msra.mxu0 %v633
    %814 = vmatprep.subr.bf16.mxu0 0
    %815 = vmatpush2.bf16.msra.mxu0 %v632
    %816 = vmatprep.subr.bf16.mxu0 0
    %817 = vmatpush2.bf16.msra.mxu0 %v631
    %818 = vmatprep.subr.bf16.mxu0 0
    %819 = vmatpush2.bf16.msra.mxu0 %v630
    %820 = vmatprep.subr.bf16.mxu0 0
    %821 = vmatpush2.bf16.msra.mxu0 %v629
    %822 = vmatprep.subr.bf16.mxu0 0
    %823 = vmatpush2.bf16.msra.mxu0 %v628
    %824 = vmatprep.subr.bf16.mxu0 0
    %825 = vmatpush2.bf16.msra.mxu0 %v627
    %826 = vmatprep.subr.bf16.mxu0 0
    %827 = vmatpush2.bf16.msra.mxu0 %v626
    %828 = vmatprep.mubr.bf16.mxu0 %v192
    %829 = vmatmul.mubr.bf16.gmra.mxu0 %v191
    %v830 = vpop.f32.mrf.mxu0
    %v831 = vadd.f32 %v790, %v830
    %v832 = vpop.f32.mrf.mxu0
    %v833 = vpop.f32.mrf.mxu0
    %v834 = vadd.f32 %v793, %v833
    %v835 = vpop.f32.mrf.mxu0
    %836 = vdwg.mxu0
    %837 = vmatprep.subr.bf16.mxu0 0
    %838 = vmatpush1.bf16.msra.mxu0 %v641
    %839 = vmatprep.subr.bf16.mxu0 0
    %840 = vmatpush1.bf16.msra.mxu0 %v640
    %841 = vmatprep.subr.bf16.mxu0 0
    %842 = vmatpush1.bf16.msra.mxu0 %v639
    %843 = vmatprep.subr.bf16.mxu0 0
    %844 = vmatpush1.bf16.msra.mxu0 %v638
    %845 = vmatprep.subr.bf16.mxu0 0
    %846 = vmatpush1.bf16.msra.mxu0 %v637
    %847 = vmatprep.subr.bf16.mxu0 0
    %848 = vmatpush1.bf16.msra.mxu0 %v636
    %849 = vmatprep.subr.bf16.mxu0 0
    %850 = vmatpush1.bf16.msra.mxu0 %v635
    %851 = vmatprep.subr.bf16.mxu0 0
    %852 = vmatpush1.bf16.msra.mxu0 %v634
    %853 = vmatprep.subr.bf16.mxu0 0
    %854 = vmatpush2.bf16.msra.mxu0 %v649
    %855 = vmatprep.subr.bf16.mxu0 0
    %856 = vmatpush2.bf16.msra.mxu0 %v648
    %857 = vmatprep.subr.bf16.mxu0 0
    %858 = vmatpush2.bf16.msra.mxu0 %v647
    %859 = vmatprep.subr.bf16.mxu0 0
    %860 = vmatpush2.bf16.msra.mxu0 %v646
    %861 = vmatprep.subr.bf16.mxu0 0
    %862 = vmatpush2.bf16.msra.mxu0 %v645
    %863 = vmatprep.subr.bf16.mxu0 0
    %864 = vmatpush2.bf16.msra.mxu0 %v644
    %865 = vmatprep.subr.bf16.mxu0 0
    %866 = vmatpush2.bf16.msra.mxu0 %v643
    %867 = vmatprep.subr.bf16.mxu0 0
    %868 = vmatpush2.bf16.msra.mxu0 %v642
    %869 = vmatprep.mubr.bf16.mxu0 %v194
    %870 = vmatmul.mubr.bf16.gmra.mxu0 %v193
    %v871 = vpop.f32.mrf.mxu0
    %v872 = vadd.f32 %v831, %v871
    %v873 = vpop.f32.mrf.mxu0
    %v874 = vpop.f32.mrf.mxu0
    %v875 = vadd.f32 %v834, %v874
    %v876 = vpop.f32.mrf.mxu0
    %877 = vdwg.mxu0
    %vm878 = vcmp.gt.f32.partialorder %v872, 0.0
    %vm879 = vcmp.gt.f32.partialorder %v875, 0.0
    %v880 = vld [vmem:[%s5] sm:$0x1]
    %v882 = vlaneseq
    %v883 = vshrl.u32 %v882, 7
    %v884 = vsub.s32 0, %v883
    %v885 = vrot.slane %v880, %v884
    %v887 = vsel %vm878, %v885, 0.0
    %v888 = vsel %vm879, %v885, 0.0
    %v889 = vld [vmem:[#allocation8] sm:$0xff]
    %v890 = vld [vmem:[#allocation8 + $0x8] sm:$0xff]
    %v891 = vld [vmem:[#allocation8 + $0x10] sm:$0xff]
    %v892 = vld [vmem:[#allocation8 + $0x18] sm:$0xff]
    %v893 = vld [vmem:[#allocation8 + $0x20] sm:$0xff]
    %v894 = vld [vmem:[#allocation8 + $0x28] sm:$0xff]
    %v895 = vld [vmem:[#allocation8 + $0x30] sm:$0xff]
    %v896 = vld [vmem:[#allocation8 + $0x38] sm:$0xff]
    %v897 = vld [vmem:[#allocation8 + $0x40] sm:$0xff]
    %v898 = vld [vmem:[#allocation8 + $0x48] sm:$0xff]
    %v899 = vld [vmem:[#allocation8 + $0x50] sm:$0xff]
    %v900 = vld [vmem:[#allocation8 + $0x58] sm:$0xff]
    %v901 = vld [vmem:[#allocation8 + $0x60] sm:$0xff]
    %v902 = vld [vmem:[#allocation8 + $0x68] sm:$0xff]
    %v903 = vld [vmem:[#allocation8 + $0x70] sm:$0xff]
    %v904 = vld [vmem:[#allocation8 + $0x78] sm:$0xff]
    %905 = vmatprep.subr.mxu0 0.0
    %906 = vmatpush1.msra.mxu0 %v904
    %907 = vmatprep.subr.mxu0 0.0
    %908 = vmatpush1.msra.mxu0 %v903
    %909 = vmatprep.subr.mxu0 0.0
    %910 = vmatpush1.msra.mxu0 %v902
    %911 = vmatprep.subr.mxu0 0.0
    %912 = vmatpush1.msra.mxu0 %v901
    %913 = vmatprep.subr.mxu0 0.0
    %914 = vmatpush1.msra.mxu0 %v900
    %915 = vmatprep.subr.mxu0 0.0
    %916 = vmatpush1.msra.mxu0 %v899
    %917 = vmatprep.subr.mxu0 0.0
    %918 = vmatpush1.msra.mxu0 %v898
    %919 = vmatprep.subr.mxu0 0.0
    %920 = vmatpush1.msra.mxu0 %v897
    %921 = vmatprep.subr.mxu0 0.0
    %922 = vmatpush1.msra.mxu0 %v896
    %923 = vmatprep.subr.mxu0 0.0
    %924 = vmatpush1.msra.mxu0 %v895
    %925 = vmatprep.subr.mxu0 0.0
    %926 = vmatpush1.msra.mxu0 %v894
    %927 = vmatprep.subr.mxu0 0.0
    %928 = vmatpush1.msra.mxu0 %v893
    %929 = vmatprep.subr.mxu0 0.0
    %930 = vmatpush1.msra.mxu0 %v892
    %931 = vmatprep.subr.mxu0 0.0
    %932 = vmatpush1.msra.mxu0 %v891
    %933 = vmatprep.subr.mxu0 0.0
    %934 = vmatpush1.msra.mxu0 %v890
    %935 = vmatprep.subr.mxu0 0.0
    %936 = vmatpush1.msra.mxu0 %v889
    %937 = vmatprep.subr.mxu0 0.0
    %938 = vmatpush2.msra.mxu0 0.0
    %939 = vmatprep.subr.mxu0 0.0
    %940 = vmatpush2.msra.mxu0 0.0
    %941 = vmatprep.subr.mxu0 0.0
    %942 = vmatpush2.msra.mxu0 0.0
    %943 = vmatprep.subr.mxu0 0.0
    %944 = vmatpush2.msra.mxu0 0.0
    %945 = vmatprep.subr.mxu0 0.0
    %946 = vmatpush2.msra.mxu0 0.0
    %947 = vmatprep.subr.mxu0 0.0
    %948 = vmatpush2.msra.mxu0 0.0
    %949 = vmatprep.subr.mxu0 0.0
    %950 = vmatpush2.msra.mxu0 0.0
    %951 = vmatprep.subr.mxu0 0.0
    %952 = vmatpush2.msra.mxu0 0.0
    %953 = vmatprep.subr.mxu0 0.0
    %954 = vmatpush2.msra.mxu0 0.0
    %955 = vmatprep.subr.mxu0 0.0
    %956 = vmatpush2.msra.mxu0 0.0
    %957 = vmatprep.subr.mxu0 0.0
    %958 = vmatpush2.msra.mxu0 0.0
    %959 = vmatprep.subr.mxu0 0.0
    %960 = vmatpush2.msra.mxu0 0.0
    %961 = vmatprep.subr.mxu0 0.0
    %962 = vmatpush2.msra.mxu0 0.0
    %963 = vmatprep.subr.mxu0 0.0
    %964 = vmatpush2.msra.mxu0 0.0
    %965 = vmatprep.subr.mxu0 0.0
    %966 = vmatpush2.msra.mxu0 0.0
    %967 = vmatprep.subr.mxu0 0.0
    %968 = vmatpush2.msra.mxu0 0.0
    %969 = vmatprep.mubr.f32.mxu0 0.0
    %970 = vmatmul.mubr.f32.gmra.mxu0 %v887
    %v971 = vpop.f32.mrf.mxu0
    %v972 = vadd.f32 0.0, %v971
    %v973 = vpop.f32.mrf.mxu0
    %974 = vmatprep.mubr.f32.mxu0 0.0
    %975 = vmatmul.mubr.f32.gmra.mxu0 %v888
    %v976 = vpop.f32.mrf.mxu0
    %v977 = vadd.f32 0.0, %v976
    %v978 = vpop.f32.mrf.mxu0
    %979 = vdwg.mxu0
    %v980 = vmul.f32 %v972, %v887
    %v981 = vmul.f32 %v977, %v888
    %982 = vadd.xlane.f32.xlu0 %v980
    %v983 = vpop.xlane.xlu0 %982
    %984 = vadd.xlane.f32.xlu0 %v981
    %v985 = vpop.xlane.xlu0 %984
    %v986 = vmax.f32 %v983, 0.0
    %v987 = vmax.f32 %v985, 0.0
    %v988 = vrsqrt.pop %v986
    %v989 = vmul.f32 %v986, %v988
    %vm990 = vcmp.eq.f32.partialorder %v986, inf
    %v991 = vsel %vm990, %v986, %v989
    %vm992 = vcmp.eq.f32.partialorder %v986, 0.0
    %v993 = vand.u32 %v986, 2147483648
    %v994 = vsel %vm992, %v993, %v991
    %v995 = vrsqrt.pop %v987
    %v996 = vmul.f32 %v987, %v995
    %vm997 = vcmp.eq.f32.partialorder %v987, inf
    %v998 = vsel %vm997, %v987, %v996
    %vm999 = vcmp.eq.f32.partialorder %v987, 0.0
    %v1000 = vand.u32 %v987, 2147483648
    %v1001 = vsel %vm999, %v1000, %v998
    %s1002 = smul.u32 0, 16
    %v1003 = vlaneseq
    %v1004 = vshrl.u32 %v1003, 7
    %v1005 = vadd.s32 %v1004, 8
    %v1006 = vstv %s1002
    %v1007 = vadd.s32 %v1006, %v1004
    %v1008 = vadd.s32 %v1006, %v1005
    %vm1009 = vcmp.lt.s32.totalorder %v1007, 2
    %vm1010 = vcmp.lt.s32.totalorder %v1008, 2
    %v1011 = vsub.f32 %v994, 1.0
    %v1012 = vsub.f32 %v1001, 1.0
    %v1013 = vmul.f32 %v1011, %v1011
    %v1014 = vmul.f32 %v1012, %v1012
    %v1015 = vsel %vm1009, %v1013, 0.0
    %v1016 = vsel %vm1010, %v1014, 0.0
    %vm1017 = vcmask 7168
    %v1018 = vsel %vm1017, %v1015, 0.0
    %v1019 = vsel %vm1017, %v1016, 0.0
    %v1020 = vadd.f32 %v1018, %v1019
    %1021 = vadd.xlane.f32.xlu0 %v1020
    %v1022 = vpop.xlane.xlu0 %1021
    %v1023 = vrot.slane %v1022, 4
    %v1024 = vadd.f32 %v1022, %v1023
    %v1025 = vrot.slane %v1024, 2
    %v1026 = vadd.f32 %v1024, %v1025
    %v1027 = vrot.slane %v1026, 1
    %v1028 = vadd.f32 %v1026, %v1027
    %s1029 = vtos %v1028
    %s1030 = scalar_lea.smem [#allocation10], 0
    %1031 = sst [smem:[%s1030]] %s1029
    // Predicated region
    $region46: #{tpu_custom_call.1} parent=1 // pred_check
      _
    $region47: #{tpu_custom_call.1} parent=1 // pred_check_branch
      %1033 = sbr.rel (0) target = $region49
    $region48: #{tpu_custom_call.1} parent=1 // pred_region
      %s1035 = ssub.s32 16, 16
      %1036 = vsyncadd [#allocation4], %s1035
      %1039 = dma.smem_to_hbm [#allocation10], 16, %s7, [#allocation4]
    $region49: #{tpu_custom_call.1} parent=1 // pred_fallthru
      _
    // Predicated region
    $region50: #{tpu_custom_call.1} parent=1 // pred_check
      _
    $region51: #{tpu_custom_call.1} parent=1 // pred_check_branch
      %1041 = sbr.rel (0) target = $region53
    $region52: #{tpu_custom_call.1} parent=1 // pred_region
      %1042 = dma.done [#allocation4], 16
    $region53: #{tpu_custom_call.1} parent=1 // pred_fallthru
      _
    %1043 = sfence
    %1044 = vsyncpa [#allocation3], 1
    %1045 = vsyncpa [#allocation6], 1
    %1046 = vsyncpa [#allocation9], 1
    %1047 = vsyncpa [#allocation4], 1

</llo_original>
